<compile_context>
chip_gen: v7x
topology: tpu7x:2x2x1
jax: 0.10.0
libtpu: 0.0.40
codegen_flags: <defaults>
</compile_context>

<pallas_src>
import functools

import jax
import jax.numpy as jnp
from jax import lax
from jax.experimental import pallas as pl
from jax.experimental.pallas import tpu as pltpu

EPS = 1e-5


# ---------------------------------------------------------------------------
# Pallas kernels
# ---------------------------------------------------------------------------

def _stats_kernel(x_ref, sum_ref, ssq_ref):
    """Accumulate per-lane sum and sum-of-squares over row tiles (f32)."""
    @pl.when(pl.program_id(0) == 0)
    def _init():
        sum_ref[...] = jnp.zeros_like(sum_ref)
        ssq_ref[...] = jnp.zeros_like(ssq_ref)

    x = x_ref[...].astype(jnp.float32)
    sum_ref[...] += jnp.sum(x, axis=0, keepdims=True)
    ssq_ref[...] += jnp.sum(x * x, axis=0, keepdims=True)


def _bn_band_conv_kernel(x_ref, s_ref, t_ref, B_ref, bias_ref, o_ref, *, relu6):
    """out_rows = [relu6]( BN(x_rows) conv3x3 W + b ) via 3 banded MXU matmuls."""
    H, Lout = o_ref.shape[1], o_ref.shape[2]
    # Fused BatchNorm on the padded tile (fields are 0 over the halo -> padding
    # stays exactly zero, matching conv-after-BN semantics).  Pure VPU work.
    x = x_ref[0].astype(jnp.float32) * s_ref[...] + t_ref[...]
    acc = jnp.zeros((H, Lout), jnp.float32)
    for ky in range(B_ref.shape[0]):                       # 3 taps along H
        acc = acc + jnp.dot(x[ky:ky + H, :], B_ref[ky],
                            preferred_element_type=jnp.float32)
    acc = acc + bias_ref[...].astype(jnp.float32)
    if relu6:
        acc = jnp.clip(acc, 0.0, 6.0)
    o_ref[0] = acc.astype(o_ref.dtype)


def _bn_band_conv_mm_shortcut_kernel(h_ref, s_ref, t_ref, B_ref, bias_ref,
                                     xs_ref, S_ref, sbias_ref, o_ref):
    """out = (xs conv W_s + b_s) + relu6( BN(h) conv3x3 W2 + b2 )  -- all fused."""
    H, Lout = o_ref.shape[1], o_ref.shape[2]
    h = h_ref[0].astype(jnp.float32) * s_ref[...] + t_ref[...]
    acc = jnp.zeros((H, Lout), jnp.float32)
    for ky in range(B_ref.shape[0]):
        acc = acc + jnp.dot(h[ky:ky + H, :], B_ref[ky],
                            preferred_element_type=jnp.float32)
    acc = jnp.clip(acc + bias_ref[...].astype(jnp.float32), 0.0, 6.0)

    xs = xs_ref[0].astype(jnp.float32)
    sc = jnp.zeros((H, Lout), jnp.float32)
    for i in range(S_ref.shape[0]):                        # 1 band (1x1) or 3 (3x3)
        sc = sc + jnp.dot(xs[i:i + H, :], S_ref[i],
                          preferred_element_type=jnp.float32)
    sc = sc + sbias_ref[...].astype(jnp.float32)
    o_ref[0] = (acc + sc).astype(o_ref.dtype)


def _bn_band_conv_add_shortcut_kernel(h_ref, s_ref, t_ref, B_ref, bias_ref,
                                      xres_ref, o_ref):
    """out = x_rows + relu6( BN(h) conv3x3 W2 + b2 )  (identity shortcut)."""
    H, Lout = o_ref.shape[1], o_ref.shape[2]
    h = h_ref[0].astype(jnp.float32) * s_ref[...] + t_ref[...]
    acc = jnp.zeros((H, Lout), jnp.float32)
    for ky in range(B_ref.shape[0]):
        acc = acc + jnp.dot(h[ky:ky + H, :], B_ref[ky],
                            preferred_element_type=jnp.float32)
    acc = jnp.clip(acc + bias_ref[...].astype(jnp.float32), 0.0, 6.0)
    o_ref[0] = (acc + xres_ref[0].astype(jnp.float32)).astype(o_ref.dtype)


# ---------------------------------------------------------------------------
# pallas_call wrappers
# ---------------------------------------------------------------------------

def _pick_row_tile(m, target=256):
    """Largest row tile <= target that divides m and is a multiple of 8 (else m)."""
    hi = min(max(8, target), m)
    for t in range(hi, 7, -1):
        if m % t == 0 and t % 8 == 0:
            return t
    return m


def _batch_stats(x2d, C):
    """Per-channel (mean, 1/sqrt(var+eps)) over all rows of a (rows, W*C) slab."""
    M, L = x2d.shape
    tile = _pick_row_tile(M, min(256, max(8, M // 2)))
    sums, ssqs = pl.pallas_call(
        _stats_kernel,
        out_shape=(jax.ShapeDtypeStruct((1, L), jnp.float32),
                   jax.ShapeDtypeStruct((1, L), jnp.float32)),
        grid=(M // tile,),
        in_specs=[pl.BlockSpec((tile, L), lambda i: (i, 0))],
        out_specs=(pl.BlockSpec((1, L), lambda i: (0, 0)),
                   pl.BlockSpec((1, L), lambda i: (0, 0))),
        compiler_params=pltpu.CompilerParams(dimension_semantics=("arbitrary",)),
    )(x2d)
    count = M * (L // C)
    csum = jnp.sum(sums.reshape(L // C, C), axis=0)
    cssq = jnp.sum(ssqs.reshape(L // C, C), axis=0)
    mean = csum / count
    # E[x^2]-mean^2 in f32; clamp guards against tiny negative from cancellation.
    # TODO(synk): Welford / two-pass accumulation for very large N*H*W.
    var = jnp.maximum(cssq / count - mean * mean, 0.0)
    return mean, lax.rsqrt(var + EPS)


def _conv_bn_relu6_pallas(xpad_rows, s_field, t_field, B, bias_row):
    N, Rin, Lin = xpad_rows.shape
    nb, K, Lout = B.shape
    H = Rin - (nb - 1)
    return pl.pallas_call(
        functools.partial(_bn_band_conv_kernel, relu6=True),
        out_shape=jax.ShapeDtypeStruct((N, H, Lout), xpad_rows.dtype),
        grid=(N,),
        in_specs=[
            pl.BlockSpec((1, Rin, Lin), lambda n: (n, 0, 0)),
            pl.BlockSpec((Rin, Lin), lambda n: (0, 0)),
            pl.BlockSpec((Rin, Lin), lambda n: (0, 0)),
            pl.BlockSpec((nb, K, Lout), lambda n: (0, 0, 0)),
            pl.BlockSpec((1, Lout), lambda n: (0, 0)),
        ],
        out_specs=pl.BlockSpec((1, H, Lout), lambda n: (n, 0, 0)),
        compiler_params=pltpu.CompilerParams(dimension_semantics=("parallel",)),
    )(xpad_rows, s_field, t_field, B, bias_row)


def _conv_bn_relu6_mm_shortcut_pallas(hpad_rows, s_field, t_field, B2, b2_row,
                                      xs_rows, S, bs_row):
    N, Rin, Lh = hpad_rows.shape
    nb, K, Lout = B2.shape
    H = Rin - (nb - 1)
    return pl.pallas_call(
        _bn_band_conv_mm_shortcut_kernel,
        out_shape=jax.ShapeDtypeStruct((N, H, Lout), hpad_rows.dtype),
        grid=(N,),
        in_specs=[
            pl.BlockSpec((1, Rin, Lh), lambda n: (n, 0, 0)),
            pl.BlockSpec((Rin, Lh), lambda n: (0, 0)),
            pl.BlockSpec((Rin, Lh), lambda n: (0, 0)),
            pl.BlockSpec((nb, K, Lout), lambda n: (0, 0, 0)),
            pl.BlockSpec((1, Lout), lambda n: (0, 0)),
            pl.BlockSpec((1, xs_rows.shape[1], xs_rows.shape[2]),
                         lambda n: (n, 0, 0)),
            pl.BlockSpec(S.shape, lambda n: (0, 0, 0)),
            pl.BlockSpec((1, Lout), lambda n: (0, 0)),
        ],
        out_specs=pl.BlockSpec((1, H, Lout), lambda n: (n, 0, 0)),
        compiler_params=pltpu.CompilerParams(dimension_semantics=("parallel",)),
    )(hpad_rows, s_field, t_field, B2, b2_row, xs_rows, S, bs_row)


def _conv_bn_relu6_add_shortcut_pallas(hpad_rows, s_field, t_field, B2, b2_row,
                                       xres_rows):
    N, Rin, Lh = hpad_rows.shape
    nb, K, Lout = B2.shape
    H = Rin - (nb - 1)
    return pl.pallas_call(
        _bn_band_conv_add_shortcut_kernel,
        out_shape=jax.ShapeDtypeStruct((N, H, Lout), hpad_rows.dtype),
        grid=(N,),
        in_specs=[
            pl.BlockSpec((1, Rin, Lh), lambda n: (n, 0, 0)),
            pl.BlockSpec((Rin, Lh), lambda n: (0, 0)),
            pl.BlockSpec((Rin, Lh), lambda n: (0, 0)),
            pl.BlockSpec((nb, K, Lout), lambda n: (0, 0, 0)),
            pl.BlockSpec((1, Lout), lambda n: (0, 0)),
            pl.BlockSpec((1, H, Lout), lambda n: (n, 0, 0)),
        ],
        out_specs=pl.BlockSpec((1, H, Lout), lambda n: (n, 0, 0)),
        compiler_params=pltpu.CompilerParams(dimension_semantics=("parallel",)),
    )(hpad_rows, s_field, t_field, B2, b2_row, xres_rows)


# ---------------------------------------------------------------------------
# weight-side preprocessing (tiny, wrapper-level JAX ops on params/stats only)
# ---------------------------------------------------------------------------

def _banded_conv3x3_weight(w_oihw, W):
    """torch OIHW (Cout,Cin,3,3) -> (3, (W+2)*Cin, W*Cout) banded row matrices."""
    Cout, Cin, KH, KW = w_oihw.shape
    wt = jnp.transpose(w_oihw, (2, 3, 1, 0))                 # (ky, kx, Cin, Cout)
    kx = jnp.arange(W + 2)[None, :] - jnp.arange(W)[:, None]  # (W, W+2): kx = wp - w
    valid = (kx >= 0) & (kx < KW)
    band = wt[:, jnp.clip(kx, 0, KW - 1)]                     # (KH, W, W+2, Cin, Cout)
    band = jnp.where(valid[None, :, :, None, None], band, 0.0)
    band = jnp.transpose(band, (0, 2, 3, 1, 4))               # (ky, wp, Cin, w, Cout)
    return band.reshape(KH, (W + 2) * Cin, W * Cout)


def _blockdiag_conv1x1_weight(wn_oc, W):
    """1x1 conv weight (Cout,Cin) -> (1, W*Cin, W*Cout) block-diagonal matrix."""
    Cout, Cin = wn_oc.shape
    eye = jnp.eye(W, dtype=wn_oc.dtype)
    blk = eye[:, None, :, None] * wn_oc.T[None, :, None, :]   # (w, Cin, w', Cout)
    return blk.reshape(1, W * Cin, W * Cout)


def _bias_row(b, W):
    """(Cout,) bias -> (1, W*Cout) lane row in (w, o) order."""
    return jnp.tile(b, W).reshape(1, W * b.shape[0])


def _norm_fields(mean, inv_std, gamma, beta, W, rows):
    """Multiplicative / additive (rows, (W+2)*C) fields implementing BatchNorm on
    the zero-padded row slab: interior -> x*s + t, halo stays exactly 0."""
    C = mean.shape[0]
    s = (gamma * inv_std).astype(jnp.float32)
    t = (beta - mean * s).astype(jnp.float32)
    lane_interior = jnp.concatenate([jnp.zeros((C,), jnp.float32),
                                     jnp.ones((W * C,), jnp.float32),
                                     jnp.zeros((C,), jnp.float32)])
    s_row = jnp.tile(s, W + 2)
    t_row = jnp.tile(t, W + 2) * lane_interior
    row_interior = jnp.concatenate([jnp.zeros((1,), jnp.float32),
                                    jnp.ones((rows - 2,), jnp.float32),
                                    jnp.zeros((1,), jnp.float32)])
    s_field = jnp.broadcast_to(s_row[None, :], (rows, (W + 2) * C))
    t_field = t_row[None, :] * row_interior[:, None]
    return s_field, t_field


# ---------------------------------------------------------------------------
# ResnetBlock2D forward (Pallas)
# ---------------------------------------------------------------------------

def resnet_block_2d_forward(x_nchw, params, *, in_channels, out_channels,
                            conv_shortcut):
    N, C, H, W = x_nchw.shape
    assert C == in_channels
    Cin, Cout = in_channels, out_channels

    # NCHW -> row-slab layout (N, H, W*C); zero halo for the 3x3 convs.
    x_rows = jnp.transpose(x_nchw, (0, 2, 3, 1)).reshape(N, H, W * Cin)
    xpad_rows = jnp.pad(x_rows, ((0, 0), (1, 1), (Cin, Cin)))

    # --- BN1 batch statistics (tiled Pallas reduction) ---
    mean1, inv1 = _batch_stats(x_rows.reshape(N * H, W * Cin), Cin)
    s1f, t1f = _norm_fields(mean1, inv1, params["norm1_w"], params["norm1_b"],
                            W, H + 2)

    # --- h1 = relu6(conv1(norm1(x)))  (BN fused into the conv kernel) ---
    B1 = _banded_conv3x3_weight(params["conv1_w"], W)
    h1 = _conv_bn_relu6_pallas(xpad_rows, s1f, t1f, B1,
                               _bias_row(params["conv1_b"], W))   # (N, H, W*Cout)

    # --- BN2 batch statistics on h1 ---
    mean2, inv2 = _batch_stats(h1.reshape(N * H, W * Cout), Cout)
    s2f, t2f = _norm_fields(mean2, inv2, params["norm2_w"], params["norm2_b"],
                            W, H + 2)
    h1pad = jnp.pad(h1, ((0, 0), (1, 1), (Cout, Cout)))

    B2 = _banded_conv3x3_weight(params["conv2_w"], W)
    b2row = _bias_row(params["conv2_b"], W)

    # --- out = shortcut(x) + relu6(conv2(norm2(h1)))   (single fused kernel) ---
    if Cin != Cout:
        if conv_shortcut:
            S = _banded_conv3x3_weight(params["conv_shortcut_w"], W)
            bs = _bias_row(params["conv_shortcut_b"], W)
            xs = xpad_rows
        else:
            S = _blockdiag_conv1x1_weight(
                params["nin_shortcut_w"].reshape(Cout, Cin), W)
            bs = _bias_row(params["nin_shortcut_b"], W)
            xs = x_rows
        out_rows = _conv_bn_relu6_mm_shortcut_pallas(h1pad, s2f, t2f, B2, b2row,
                                                     xs, S, bs)
    else:
        out_rows = _conv_bn_relu6_add_shortcut_pallas(h1pad, s2f, t2f, B2, b2row,
                                                      x_rows)

    return jnp.transpose(out_rows.reshape(N, H, W, Cout), (0, 3, 1, 2))


# ---------------------------------------------------------------------------
# pure-JAX reference (correctness check only)
# ---------------------------------------------------------------------------

def _ref_forward(x, params, *, in_channels, out_channels, conv_shortcut):
    def bn(h, g, b):
        mean = jnp.mean(h, axis=(0, 2, 3), keepdims=True)
        var = jnp.mean((h - mean) ** 2, axis=(0, 2, 3), keepdims=True)
        return ((h - mean) * lax.rsqrt(var + EPS) * g.reshape(1, -1, 1, 1)
                + b.reshape(1, -1, 1, 1))

    def conv(h, w, b, pad):
        out = lax.conv_general_dilated(h, w, (1, 1), [(pad, pad), (pad, pad)],
                                       dimension_numbers=("NCHW", "OIHW", "NCHW"))
        return out + b.reshape(1, -1, 1, 1)

    h = bn(x, params["norm1_w"], params["norm1_b"])
    h = jnp.clip(conv(h, params["conv1_w"], params["conv1_b"], 1), 0.0, 6.0)
    h = bn(h, params["norm2_w"], params["norm2_b"])
    h = jnp.clip(conv(h, params["conv2_w"], params["conv2_b"], 1), 0.0, 6.0)
    if in_channels != out_channels:
        if conv_shortcut:
            x = conv(x, params["conv_shortcut_w"], params["conv_shortcut_b"], 1)
        else:
            x = conv(x, params["nin_shortcut_w"], params["nin_shortcut_b"], 0)
    return x + h


# ---------------------------------------------------------------------------
# deterministic parameter init (shapes from the module's __init__)
# ---------------------------------------------------------------------------

def init_params(key, in_channels, out_channels, conv_shortcut):
    ks = jax.random.split(key, 8)
    p = {
        "norm1_w": jnp.ones((in_channels,), jnp.float32),
        "norm1_b": jnp.zeros((in_channels,), jnp.float32),
        "conv1_w": 0.1 * jax.random.normal(ks[0], (out_channels, in_channels, 3, 3), jnp.float32),
        "conv1_b": 0.05 * jax.random.normal(ks[1], (out_channels,), jnp.float32),
        "norm2_w": jnp.ones((out_channels,), jnp.float32),
        "norm2_b": jnp.zeros((out_channels,), jnp.float32),
        "conv2_w": 0.1 * jax.random.normal(ks[2], (out_channels, out_channels, 3, 3), jnp.float32),
        "conv2_b": 0.05 * jax.random.normal(ks[3], (out_channels,), jnp.float32),
    }
    if in_channels != out_channels:
        if conv_shortcut:
            p["conv_shortcut_w"] = 0.1 * jax.random.normal(ks[4], (out_channels, in_channels, 3, 3), jnp.float32)
            p["conv_shortcut_b"] = 0.05 * jax.random.normal(ks[5], (out_channels,), jnp.float32)
        else:
            p["nin_shortcut_w"] = 0.1 * jax.random.normal(ks[6], (out_channels, in_channels, 1, 1), jnp.float32)
            p["nin_shortcut_b"] = 0.05 * jax.random.normal(ks[7], (out_channels,), jnp.float32)
    return p


if __name__ == "__main__":
    in_channels, out_channels = 4, 8
    conv_shortcut = False       # -> nin_shortcut (1x1 conv) path is exercised

    key = jax.random.PRNGKey(0)
    kx, kp = jax.random.split(key)
    x = jax.random.normal(kx, (2, in_channels, 16, 16), jnp.float32)  # NCHW
    params = init_params(kp, in_channels, out_channels, conv_shortcut)

    fwd = jax.jit(functools.partial(resnet_block_2d_forward,
                                    in_channels=in_channels,
                                    out_channels=out_channels,
                                    conv_shortcut=conv_shortcut))
    out = jax.block_until_ready(fwd(x, params))

    assert out.shape == (2, out_channels, 16, 16)
    ref = _ref_forward(x, params, in_channels=in_channels,
                       out_channels=out_channels, conv_shortcut=conv_shortcut)
    if not bool(jnp.allclose(out, ref, atol=1e-3, rtol=1e-3)):
        raise AssertionError("Pallas ResnetBlock2D does not match reference")

    print("KERNEL_OK")
</pallas_src>

<mosaic_0001>
module attributes {stable_mosaic.version = 11 : i64} {
  func.func @_stats_kernel(%arg0: i32, %arg1: memref<16x64xf32, #tpu.memory_space<vmem>>, %arg2: memref<1x64xf32, #tpu.memory_space<vmem>>, %arg3: memref<1x64xf32, #tpu.memory_space<vmem>>) attributes {dimension_semantics = [#tpu.dimension_semantics<arbitrary>], iteration_bounds = array<i64: 2>, scalar_prefetch = 0 : i64, scratch_operands = 0 : i64, tpu.core_type = #tpu.core_type<tc>, window_params = [{transform_indices = @transform_0, window_bounds = array<i64: 16, 64>}, {pipeline_mode = #tpu.pipeline_mode<synchronous>, transform_indices = @transform_1, window_bounds = array<i64: 1, 64>}, {pipeline_mode = #tpu.pipeline_mode<synchronous>, transform_indices = @transform_2, window_bounds = array<i64: 1, 64>}]} {
    %c0_i32 = arith.constant 0 : i32
    %0 = arith.cmpi eq, %arg0, %c0_i32 : i32
    %1 = arith.extui %0 : i1 to i32
    %c0_i32_0 = arith.constant 0 : i32
    %2 = arith.cmpi ne, %1, %c0_i32_0 : i32
    scf.if %2 {
      %cst_11 = arith.constant 0.000000e+00 : f32
      %15 = vector.broadcast %cst_11 : f32 to vector<1x64xf32>
      %c0_12 = arith.constant 0 : index
      %c0_13 = arith.constant 0 : index
      %16 = vector.load %arg2[%c0_12, %c0_13] : memref<1x64xf32, #tpu.memory_space<vmem>>, vector<1x64xf32>
      tpu.vector_store %arg2[%c0_12, %c0_13], %15 {strides = array<i32>} : memref<1x64xf32, #tpu.memory_space<vmem>>, vector<1x64xf32>,
      %cst_14 = arith.constant 0.000000e+00 : f32
      %17 = vector.broadcast %cst_14 : f32 to vector<1x64xf32>
      %c0_15 = arith.constant 0 : index
      %c0_16 = arith.constant 0 : index
      %18 = vector.load %arg3[%c0_15, %c0_16] : memref<1x64xf32, #tpu.memory_space<vmem>>, vector<1x64xf32>
      tpu.vector_store %arg3[%c0_15, %c0_16], %17 {strides = array<i32>} : memref<1x64xf32, #tpu.memory_space<vmem>>, vector<1x64xf32>,
    } else {
    }
    %c0 = arith.constant 0 : index
    %c0_1 = arith.constant 0 : index
    %3 = vector.load %arg1[%c0, %c0_1] : memref<16x64xf32, #tpu.memory_space<vmem>>, vector<16x64xf32>
    %c0_2 = arith.constant 0 : index
    %c0_3 = arith.constant 0 : index
    %4 = vector.load %arg2[%c0_2, %c0_3] : memref<1x64xf32, #tpu.memory_space<vmem>>, vector<1x64xf32>
    %cst = arith.constant dense<0.000000e+00> : vector<64xf32>
    %5 = vector.multi_reduction <add>, %3, %cst [0] : vector<16x64xf32> to vector<64xf32>
    %6 = vector.shape_cast %5 : vector<64xf32> to vector<1x64xf32>
    %7 = arith.addf %4, %6 : vector<1x64xf32>
    %c0_4 = arith.constant 0 : index
    %c0_5 = arith.constant 0 : index
    %8 = vector.load %arg2[%c0_4, %c0_5] : memref<1x64xf32, #tpu.memory_space<vmem>>, vector<1x64xf32>
    tpu.vector_store %arg2[%c0_4, %c0_5], %7 {strides = array<i32>} : memref<1x64xf32, #tpu.memory_space<vmem>>, vector<1x64xf32>,
    %c0_6 = arith.constant 0 : index
    %c0_7 = arith.constant 0 : index
    %9 = vector.load %arg3[%c0_6, %c0_7] : memref<1x64xf32, #tpu.memory_space<vmem>>, vector<1x64xf32>
    %10 = arith.mulf %3, %3 : vector<16x64xf32>
    %cst_8 = arith.constant dense<0.000000e+00> : vector<64xf32>
    %11 = vector.multi_reduction <add>, %10, %cst_8 [0] : vector<16x64xf32> to vector<64xf32>
    %12 = vector.shape_cast %11 : vector<64xf32> to vector<1x64xf32>
    %13 = arith.addf %9, %12 : vector<1x64xf32>
    %c0_9 = arith.constant 0 : index
    %c0_10 = arith.constant 0 : index
    %14 = vector.load %arg3[%c0_9, %c0_10] : memref<1x64xf32, #tpu.memory_space<vmem>>, vector<1x64xf32>
    tpu.vector_store %arg3[%c0_9, %c0_10], %13 {strides = array<i32>} : memref<1x64xf32, #tpu.memory_space<vmem>>, vector<1x64xf32>,
    return
  }
  func.func @transform_0(%arg0: i32) -> (i32, i32) {
    %c0_i32 = arith.constant 0 : i32
    %c0_i32_0 = arith.constant 0 : i32
    return %arg0, %c0_i32 : i32, i32
  }
  func.func @transform_1(%arg0: i32) -> (i32, i32) {
    %c0_i32 = arith.constant 0 : i32
    %c0_i32_0 = arith.constant 0 : i32
    %c0_i32_1 = arith.constant 0 : i32
    return %c0_i32, %c0_i32_0 : i32, i32
  }
  func.func @transform_2(%arg0: i32) -> (i32, i32) {
    %c0_i32 = arith.constant 0 : i32
    %c0_i32_0 = arith.constant 0 : i32
    %c0_i32_1 = arith.constant 0 : i32
    return %c0_i32, %c0_i32_0 : i32, i32
  }
}

module attributes {stable_mosaic.version = 11 : i64} {
  func.func @_bn_band_conv_kernel(%arg0: i32, %arg1: memref<1x18x72xf32, #tpu.memory_space<vmem>>, %arg2: memref<18x72xf32, #tpu.memory_space<vmem>>, %arg3: memref<18x72xf32, #tpu.memory_space<vmem>>, %arg4: memref<3x72x128xf32, #tpu.memory_space<vmem>>, %arg5: memref<1x128xf32, #tpu.memory_space<vmem>>, %arg6: memref<1x16x128xf32, #tpu.memory_space<vmem>>) attributes {dimension_semantics = [#tpu.dimension_semantics<parallel>], iteration_bounds = array<i64: 2>, scalar_prefetch = 0 : i64, scratch_operands = 0 : i64, tpu.core_type = #tpu.core_type<tc>, window_params = [{transform_indices = @transform_0, window_bounds = array<i64: 1, 18, 72>}, {pipeline_mode = #tpu.pipeline_mode<synchronous>, transform_indices = @transform_1, window_bounds = array<i64: 18, 72>}, {pipeline_mode = #tpu.pipeline_mode<synchronous>, transform_indices = @transform_2, window_bounds = array<i64: 18, 72>}, {pipeline_mode = #tpu.pipeline_mode<synchronous>, transform_indices = @transform_3, window_bounds = array<i64: 3, 72, 128>}, {pipeline_mode = #tpu.pipeline_mode<synchronous>, transform_indices = @transform_4, window_bounds = array<i64: 1, 128>}, {transform_indices = @transform_5, window_bounds = array<i64: 1, 16, 128>}]} {
    %c0 = arith.constant 0 : index
    %c0_0 = arith.constant 0 : index
    %c0_1 = arith.constant 0 : index
    %0 = vector.load %arg1[%c0, %c0_0, %c0_1] : memref<1x18x72xf32, #tpu.memory_space<vmem>>, vector<1x18x72xf32>
    %1 = vector.shape_cast %0 : vector<1x18x72xf32> to vector<18x72xf32>
    %c0_2 = arith.constant 0 : index
    %c0_3 = arith.constant 0 : index
    %2 = vector.load %arg2[%c0_2, %c0_3] : memref<18x72xf32, #tpu.memory_space<vmem>>, vector<18x72xf32>
    %3 = arith.mulf %1, %2 : vector<18x72xf32>
    %c0_4 = arith.constant 0 : index
    %c0_5 = arith.constant 0 : index
    %4 = vector.load %arg3[%c0_4, %c0_5] : memref<18x72xf32, #tpu.memory_space<vmem>>, vector<18x72xf32>
    %5 = arith.addf %3, %4 : vector<18x72xf32>
    %cst = arith.constant 0.000000e+00 : f32
    %6 = vector.broadcast %cst : f32 to vector<16x128xf32>
    %7 = vector.extract_strided_slice %5 {offsets = [0, 0], sizes = [16, 72], strides = [1, 1]} : vector<18x72xf32> to vector<16x72xf32>
    %c0_6 = arith.constant 0 : index
    %c0_7 = arith.constant 0 : index
    %c0_8 = arith.constant 0 : index
    %8 = vector.load %arg4[%c0_6, %c0_7, %c0_8] : memref<3x72x128xf32, #tpu.memory_space<vmem>>, vector<1x72x128xf32>
    %9 = vector.shape_cast %8 : vector<1x72x128xf32> to vector<72x128xf32>
    %cst_9 = arith.constant dense<0.000000e+00> : vector<16x128xf32>
    %10 = tpu.matmul %7, %9, %cst_9 {dimension_numbers = #tpu.dot_dimension_numbers<[1], [0], [0], [1], [0, 0, 1, 1], [], []>} : vector<16x72xf32>, vector<72x128xf32>, vector<16x128xf32> -> vector<16x128xf32>
    %11 = arith.addf %6, %10 : vector<16x128xf32>
    %12 = vector.extract_strided_slice %5 {offsets = [1, 0], sizes = [16, 72], strides = [1, 1]} : vector<18x72xf32> to vector<16x72xf32>
    %c1 = arith.constant 1 : index
    %c0_10 = arith.constant 0 : index
    %c0_11 = arith.constant 0 : index
    %13 = vector.load %arg4[%c1, %c0_10, %c0_11] : memref<3x72x128xf32, #tpu.memory_space<vmem>>, vector<1x72x128xf32>
    %14 = vector.shape_cast %13 : vector<1x72x128xf32> to vector<72x128xf32>
    %cst_12 = arith.constant dense<0.000000e+00> : vector<16x128xf32>
    %15 = tpu.matmul %12, %14, %cst_12 {dimension_numbers = #tpu.dot_dimension_numbers<[1], [0], [0], [1], [0, 0, 1, 1], [], []>} : vector<16x72xf32>, vector<72x128xf32>, vector<16x128xf32> -> vector<16x128xf32>
    %16 = arith.addf %11, %15 : vector<16x128xf32>
    %17 = vector.extract_strided_slice %5 {offsets = [2, 0], sizes = [16, 72], strides = [1, 1]} : vector<18x72xf32> to vector<16x72xf32>
    %c2 = arith.constant 2 : index
    %c0_13 = arith.constant 0 : index
    %c0_14 = arith.constant 0 : index
    %18 = vector.load %arg4[%c2, %c0_13, %c0_14] : memref<3x72x128xf32, #tpu.memory_space<vmem>>, vector<1x72x128xf32>
    %19 = vector.shape_cast %18 : vector<1x72x128xf32> to vector<72x128xf32>
    %cst_15 = arith.constant dense<0.000000e+00> : vector<16x128xf32>
    %20 = tpu.matmul %17, %19, %cst_15 {dimension_numbers = #tpu.dot_dimension_numbers<[1], [0], [0], [1], [0, 0, 1, 1], [], []>} : vector<16x72xf32>, vector<72x128xf32>, vector<16x128xf32> -> vector<16x128xf32>
    %21 = arith.addf %16, %20 : vector<16x128xf32>
    %c0_16 = arith.constant 0 : index
    %c0_17 = arith.constant 0 : index
    %22 = vector.load %arg5[%c0_16, %c0_17] : memref<1x128xf32, #tpu.memory_space<vmem>>, vector<1x128xf32>
    %23 = vector.broadcast %22 : vector<1x128xf32> to vector<16x128xf32>
    %24 = arith.addf %21, %23 : vector<16x128xf32>
    %cst_18 = arith.constant 0.000000e+00 : f32
    %cst_19 = arith.constant 6.000000e+00 : f32
    %25 = vector.broadcast %cst_18 : f32 to vector<16x128xf32>
    %26 = arith.maximumf %25, %24 : vector<16x128xf32>
    %27 = vector.broadcast %cst_19 : f32 to vector<16x128xf32>
    %28 = arith.minimumf %27, %26 : vector<16x128xf32>
    %c0_20 = arith.constant 0 : index
    %c0_21 = arith.constant 0 : index
    %c0_22 = arith.constant 0 : index
    %29 = vector.load %arg6[%c0_20, %c0_21, %c0_22] : memref<1x16x128xf32, #tpu.memory_space<vmem>>, vector<1x16x128xf32>
    %30 = vector.shape_cast %29 : vector<1x16x128xf32> to vector<16x128xf32>
    %31 = vector.shape_cast %28 : vector<16x128xf32> to vector<1x16x128xf32>
    tpu.vector_store %arg6[%c0_20, %c0_21, %c0_22], %31 {strides = array<i32>} : memref<1x16x128xf32, #tpu.memory_space<vmem>>, vector<1x16x128xf32>,
    return
  }
  func.func @transform_0(%arg0: i32) -> (i32, i32, i32) {
    %c0_i32 = arith.constant 0 : i32
    %c0_i32_0 = arith.constant 0 : i32
    %c0_i32_1 = arith.constant 0 : i32
    return %arg0, %c0_i32, %c0_i32_0 : i32, i32, i32
  }
  func.func @transform_1(%arg0: i32) -> (i32, i32) {
    %c0_i32 = arith.constant 0 : i32
    %c0_i32_0 = arith.constant 0 : i32
    %c0_i32_1 = arith.constant 0 : i32
    return %c0_i32, %c0_i32_0 : i32, i32
  }
  func.func @transform_2(%arg0: i32) -> (i32, i32) {
    %c0_i32 = arith.constant 0 : i32
    %c0_i32_0 = arith.constant 0 : i32
    %c0_i32_1 = arith.constant 0 : i32
    return %c0_i32, %c0_i32_0 : i32, i32
  }
  func.func @transform_3(%arg0: i32) -> (i32, i32, i32) {
    %c0_i32 = arith.constant 0 : i32
    %c0_i32_0 = arith.constant 0 : i32
    %c0_i32_1 = arith.constant 0 : i32
    %c0_i32_2 = arith.constant 0 : i32
    return %c0_i32, %c0_i32_0, %c0_i32_1 : i32, i32, i32
  }
  func.func @transform_4(%arg0: i32) -> (i32, i32) {
    %c0_i32 = arith.constant 0 : i32
    %c0_i32_0 = arith.constant 0 : i32
    %c0_i32_1 = arith.constant 0 : i32
    return %c0_i32, %c0_i32_0 : i32, i32
  }
  func.func @transform_5(%arg0: i32) -> (i32, i32, i32) {
    %c0_i32 = arith.constant 0 : i32
    %c0_i32_0 = arith.constant 0 : i32
    %c0_i32_1 = arith.constant 0 : i32
    return %arg0, %c0_i32, %c0_i32_0 : i32, i32, i32
  }
}

module attributes {stable_mosaic.version = 11 : i64} {
  func.func @_stats_kernel(%arg0: i32, %arg1: memref<16x128xf32, #tpu.memory_space<vmem>>, %arg2: memref<1x128xf32, #tpu.memory_space<vmem>>, %arg3: memref<1x128xf32, #tpu.memory_space<vmem>>) attributes {dimension_semantics = [#tpu.dimension_semantics<arbitrary>], iteration_bounds = array<i64: 2>, scalar_prefetch = 0 : i64, scratch_operands = 0 : i64, tpu.core_type = #tpu.core_type<tc>, window_params = [{transform_indices = @transform_0, window_bounds = array<i64: 16, 128>}, {pipeline_mode = #tpu.pipeline_mode<synchronous>, transform_indices = @transform_1, window_bounds = array<i64: 1, 128>}, {pipeline_mode = #tpu.pipeline_mode<synchronous>, transform_indices = @transform_2, window_bounds = array<i64: 1, 128>}]} {
    %c0_i32 = arith.constant 0 : i32
    %0 = arith.cmpi eq, %arg0, %c0_i32 : i32
    %1 = arith.extui %0 : i1 to i32
    %c0_i32_0 = arith.constant 0 : i32
    %2 = arith.cmpi ne, %1, %c0_i32_0 : i32
    scf.if %2 {
      %cst_11 = arith.constant 0.000000e+00 : f32
      %15 = vector.broadcast %cst_11 : f32 to vector<1x128xf32>
      %c0_12 = arith.constant 0 : index
      %c0_13 = arith.constant 0 : index
      %16 = vector.load %arg2[%c0_12, %c0_13] : memref<1x128xf32, #tpu.memory_space<vmem>>, vector<1x128xf32>
      tpu.vector_store %arg2[%c0_12, %c0_13], %15 {strides = array<i32>} : memref<1x128xf32, #tpu.memory_space<vmem>>, vector<1x128xf32>,
      %cst_14 = arith.constant 0.000000e+00 : f32
      %17 = vector.broadcast %cst_14 : f32 to vector<1x128xf32>
      %c0_15 = arith.constant 0 : index
      %c0_16 = arith.constant 0 : index
      %18 = vector.load %arg3[%c0_15, %c0_16] : memref<1x128xf32, #tpu.memory_space<vmem>>, vector<1x128xf32>
      tpu.vector_store %arg3[%c0_15, %c0_16], %17 {strides = array<i32>} : memref<1x128xf32, #tpu.memory_space<vmem>>, vector<1x128xf32>,
    } else {
    }
    %c0 = arith.constant 0 : index
    %c0_1 = arith.constant 0 : index
    %3 = vector.load %arg1[%c0, %c0_1] : memref<16x128xf32, #tpu.memory_space<vmem>>, vector<16x128xf32>
    %c0_2 = arith.constant 0 : index
    %c0_3 = arith.constant 0 : index
    %4 = vector.load %arg2[%c0_2, %c0_3] : memref<1x128xf32, #tpu.memory_space<vmem>>, vector<1x128xf32>
    %cst = arith.constant dense<0.000000e+00> : vector<128xf32>
    %5 = vector.multi_reduction <add>, %3, %cst [0] : vector<16x128xf32> to vector<128xf32>
    %6 = vector.shape_cast %5 : vector<128xf32> to vector<1x128xf32>
    %7 = arith.addf %4, %6 : vector<1x128xf32>
    %c0_4 = arith.constant 0 : index
    %c0_5 = arith.constant 0 : index
    %8 = vector.load %arg2[%c0_4, %c0_5] : memref<1x128xf32, #tpu.memory_space<vmem>>, vector<1x128xf32>
    tpu.vector_store %arg2[%c0_4, %c0_5], %7 {strides = array<i32>} : memref<1x128xf32, #tpu.memory_space<vmem>>, vector<1x128xf32>,
    %c0_6 = arith.constant 0 : index
    %c0_7 = arith.constant 0 : index
    %9 = vector.load %arg3[%c0_6, %c0_7] : memref<1x128xf32, #tpu.memory_space<vmem>>, vector<1x128xf32>
    %10 = arith.mulf %3, %3 : vector<16x128xf32>
    %cst_8 = arith.constant dense<0.000000e+00> : vector<128xf32>
    %11 = vector.multi_reduction <add>, %10, %cst_8 [0] : vector<16x128xf32> to vector<128xf32>
    %12 = vector.shape_cast %11 : vector<128xf32> to vector<1x128xf32>
    %13 = arith.addf %9, %12 : vector<1x128xf32>
    %c0_9 = arith.constant 0 : index
    %c0_10 = arith.constant 0 : index
    %14 = vector.load %arg3[%c0_9, %c0_10] : memref<1x128xf32, #tpu.memory_space<vmem>>, vector<1x128xf32>
    tpu.vector_store %arg3[%c0_9, %c0_10], %13 {strides = array<i32>} : memref<1x128xf32, #tpu.memory_space<vmem>>, vector<1x128xf32>,
    return
  }
  func.func @transform_0(%arg0: i32) -> (i32, i32) {
    %c0_i32 = arith.constant 0 : i32
    %c0_i32_0 = arith.constant 0 : i32
    return %arg0, %c0_i32 : i32, i32
  }
  func.func @transform_1(%arg0: i32) -> (i32, i32) {
    %c0_i32 = arith.constant 0 : i32
    %c0_i32_0 = arith.constant 0 : i32
    %c0_i32_1 = arith.constant 0 : i32
    return %c0_i32, %c0_i32_0 : i32, i32
  }
  func.func @transform_2(%arg0: i32) -> (i32, i32) {
    %c0_i32 = arith.constant 0 : i32
    %c0_i32_0 = arith.constant 0 : i32
    %c0_i32_1 = arith.constant 0 : i32
    return %c0_i32, %c0_i32_0 : i32, i32
  }
}

module attributes {stable_mosaic.version = 11 : i64} {
  func.func @_bn_band_conv_mm_shortcut_kernel(%arg0: i32, %arg1: memref<1x18x144xf32, #tpu.memory_space<vmem>>, %arg2: memref<18x144xf32, #tpu.memory_space<vmem>>, %arg3: memref<18x144xf32, #tpu.memory_space<vmem>>, %arg4: memref<3x144x128xf32, #tpu.memory_space<vmem>>, %arg5: memref<1x128xf32, #tpu.memory_space<vmem>>, %arg6: memref<1x16x64xf32, #tpu.memory_space<vmem>>, %arg7: memref<1x64x128xf32, #tpu.memory_space<vmem>>, %arg8: memref<1x128xf32, #tpu.memory_space<vmem>>, %arg9: memref<1x16x128xf32, #tpu.memory_space<vmem>>) attributes {dimension_semantics = [#tpu.dimension_semantics<parallel>], iteration_bounds = array<i64: 2>, scalar_prefetch = 0 : i64, scratch_operands = 0 : i64, tpu.core_type = #tpu.core_type<tc>, window_params = [{transform_indices = @transform_0, window_bounds = array<i64: 1, 18, 144>}, {pipeline_mode = #tpu.pipeline_mode<synchronous>, transform_indices = @transform_1, window_bounds = array<i64: 18, 144>}, {pipeline_mode = #tpu.pipeline_mode<synchronous>, transform_indices = @transform_2, window_bounds = array<i64: 18, 144>}, {pipeline_mode = #tpu.pipeline_mode<synchronous>, transform_indices = @transform_3, window_bounds = array<i64: 3, 144, 128>}, {pipeline_mode = #tpu.pipeline_mode<synchronous>, transform_indices = @transform_4, window_bounds = array<i64: 1, 128>}, {transform_indices = @transform_5, window_bounds = array<i64: 1, 16, 64>}, {pipeline_mode = #tpu.pipeline_mode<synchronous>, transform_indices = @transform_6, window_bounds = array<i64: 1, 64, 128>}, {pipeline_mode = #tpu.pipeline_mode<synchronous>, transform_indices = @transform_7, window_bounds = array<i64: 1, 128>}, {transform_indices = @transform_8, window_bounds = array<i64: 1, 16, 128>}]} {
    %c0 = arith.constant 0 : index
    %c0_0 = arith.constant 0 : index
    %c0_1 = arith.constant 0 : index
    %0 = vector.load %arg1[%c0, %c0_0, %c0_1] : memref<1x18x144xf32, #tpu.memory_space<vmem>>, vector<1x18x144xf32>
    %1 = vector.shape_cast %0 : vector<1x18x144xf32> to vector<18x144xf32>
    %c0_2 = arith.constant 0 : index
    %c0_3 = arith.constant 0 : index
    %2 = vector.load %arg2[%c0_2, %c0_3] : memref<18x144xf32, #tpu.memory_space<vmem>>, vector<18x144xf32>
    %3 = arith.mulf %1, %2 : vector<18x144xf32>
    %c0_4 = arith.constant 0 : index
    %c0_5 = arith.constant 0 : index
    %4 = vector.load %arg3[%c0_4, %c0_5] : memref<18x144xf32, #tpu.memory_space<vmem>>, vector<18x144xf32>
    %5 = arith.addf %3, %4 : vector<18x144xf32>
    %cst = arith.constant 0.000000e+00 : f32
    %6 = vector.broadcast %cst : f32 to vector<16x128xf32>
    %7 = vector.extract_strided_slice %5 {offsets = [0, 0], sizes = [16, 144], strides = [1, 1]} : vector<18x144xf32> to vector<16x144xf32>
    %c0_6 = arith.constant 0 : index
    %c0_7 = arith.constant 0 : index
    %c0_8 = arith.constant 0 : index
    %8 = vector.load %arg4[%c0_6, %c0_7, %c0_8] : memref<3x144x128xf32, #tpu.memory_space<vmem>>, vector<1x144x128xf32>
    %9 = vector.shape_cast %8 : vector<1x144x128xf32> to vector<144x128xf32>
    %cst_9 = arith.constant dense<0.000000e+00> : vector<16x128xf32>
    %10 = tpu.matmul %7, %9, %cst_9 {dimension_numbers = #tpu.dot_dimension_numbers<[1], [0], [0], [1], [0, 0, 1, 1], [], []>} : vector<16x144xf32>, vector<144x128xf32>, vector<16x128xf32> -> vector<16x128xf32>
    %11 = arith.addf %6, %10 : vector<16x128xf32>
    %12 = vector.extract_strided_slice %5 {offsets = [1, 0], sizes = [16, 144], strides = [1, 1]} : vector<18x144xf32> to vector<16x144xf32>
    %c1 = arith.constant 1 : index
    %c0_10 = arith.constant 0 : index
    %c0_11 = arith.constant 0 : index
    %13 = vector.load %arg4[%c1, %c0_10, %c0_11] : memref<3x144x128xf32, #tpu.memory_space<vmem>>, vector<1x144x128xf32>
    %14 = vector.shape_cast %13 : vector<1x144x128xf32> to vector<144x128xf32>
    %cst_12 = arith.constant dense<0.000000e+00> : vector<16x128xf32>
    %15 = tpu.matmul %12, %14, %cst_12 {dimension_numbers = #tpu.dot_dimension_numbers<[1], [0], [0], [1], [0, 0, 1, 1], [], []>} : vector<16x144xf32>, vector<144x128xf32>, vector<16x128xf32> -> vector<16x128xf32>
    %16 = arith.addf %11, %15 : vector<16x128xf32>
    %17 = vector.extract_strided_slice %5 {offsets = [2, 0], sizes = [16, 144], strides = [1, 1]} : vector<18x144xf32> to vector<16x144xf32>
    %c2 = arith.constant 2 : index
    %c0_13 = arith.constant 0 : index
    %c0_14 = arith.constant 0 : index
    %18 = vector.load %arg4[%c2, %c0_13, %c0_14] : memref<3x144x128xf32, #tpu.memory_space<vmem>>, vector<1x144x128xf32>
    %19 = vector.shape_cast %18 : vector<1x144x128xf32> to vector<144x128xf32>
    %cst_15 = arith.constant dense<0.000000e+00> : vector<16x128xf32>
    %20 = tpu.matmul %17, %19, %cst_15 {dimension_numbers = #tpu.dot_dimension_numbers<[1], [0], [0], [1], [0, 0, 1, 1], [], []>} : vector<16x144xf32>, vector<144x128xf32>, vector<16x128xf32> -> vector<16x128xf32>
    %21 = arith.addf %16, %20 : vector<16x128xf32>
    %c0_16 = arith.constant 0 : index
    %c0_17 = arith.constant 0 : index
    %22 = vector.load %arg5[%c0_16, %c0_17] : memref<1x128xf32, #tpu.memory_space<vmem>>, vector<1x128xf32>
    %23 = vector.broadcast %22 : vector<1x128xf32> to vector<16x128xf32>
    %24 = arith.addf %21, %23 : vector<16x128xf32>
    %cst_18 = arith.constant 0.000000e+00 : f32
    %cst_19 = arith.constant 6.000000e+00 : f32
    %25 = vector.broadcast %cst_18 : f32 to vector<16x128xf32>
    %26 = arith.maximumf %25, %24 : vector<16x128xf32>
    %27 = vector.broadcast %cst_19 : f32 to vector<16x128xf32>
    %28 = arith.minimumf %27, %26 : vector<16x128xf32>
    %c0_20 = arith.constant 0 : index
    %c0_21 = arith.constant 0 : index
    %c0_22 = arith.constant 0 : index
    %29 = vector.load %arg6[%c0_20, %c0_21, %c0_22] : memref<1x16x64xf32, #tpu.memory_space<vmem>>, vector<1x16x64xf32>
    %30 = vector.shape_cast %29 : vector<1x16x64xf32> to vector<16x64xf32>
    %cst_23 = arith.constant 0.000000e+00 : f32
    %31 = vector.broadcast %cst_23 : f32 to vector<16x128xf32>
    %c0_24 = arith.constant 0 : index
    %c0_25 = arith.constant 0 : index
    %c0_26 = arith.constant 0 : index
    %32 = vector.load %arg7[%c0_24, %c0_25, %c0_26] : memref<1x64x128xf32, #tpu.memory_space<vmem>>, vector<1x64x128xf32>
    %33 = vector.shape_cast %32 : vector<1x64x128xf32> to vector<64x128xf32>
    %cst_27 = arith.constant dense<0.000000e+00> : vector<16x128xf32>
    %34 = tpu.matmul %30, %33, %cst_27 {dimension_numbers = #tpu.dot_dimension_numbers<[1], [0], [0], [1], [0, 0, 1, 1], [], []>} : vector<16x64xf32>, vector<64x128xf32>, vector<16x128xf32> -> vector<16x128xf32>
    %35 = arith.addf %31, %34 : vector<16x128xf32>
    %c0_28 = arith.constant 0 : index
    %c0_29 = arith.constant 0 : index
    %36 = vector.load %arg8[%c0_28, %c0_29] : memref<1x128xf32, #tpu.memory_space<vmem>>, vector<1x128xf32>
    %37 = vector.broadcast %36 : vector<1x128xf32> to vector<16x128xf32>
    %38 = arith.addf %35, %37 : vector<16x128xf32>
    %39 = arith.addf %28, %38 : vector<16x128xf32>
    %c0_30 = arith.constant 0 : index
    %c0_31 = arith.constant 0 : index
    %c0_32 = arith.constant 0 : index
    %40 = vector.load %arg9[%c0_30, %c0_31, %c0_32] : memref<1x16x128xf32, #tpu.memory_space<vmem>>, vector<1x16x128xf32>
    %41 = vector.shape_cast %40 : vector<1x16x128xf32> to vector<16x128xf32>
    %42 = vector.shape_cast %39 : vector<16x128xf32> to vector<1x16x128xf32>
    tpu.vector_store %arg9[%c0_30, %c0_31, %c0_32], %42 {strides = array<i32>} : memref<1x16x128xf32, #tpu.memory_space<vmem>>, vector<1x16x128xf32>,
    return
  }
  func.func @transform_0(%arg0: i32) -> (i32, i32, i32) {
    %c0_i32 = arith.constant 0 : i32
    %c0_i32_0 = arith.constant 0 : i32
    %c0_i32_1 = arith.constant 0 : i32
    return %arg0, %c0_i32, %c0_i32_0 : i32, i32, i32
  }
  func.func @transform_1(%arg0: i32) -> (i32, i32) {
    %c0_i32 = arith.constant 0 : i32
    %c0_i32_0 = arith.constant 0 : i32
    %c0_i32_1 = arith.constant 0 : i32
    return %c0_i32, %c0_i32_0 : i32, i32
  }
  func.func @transform_2(%arg0: i32) -> (i32, i32) {
    %c0_i32 = arith.constant 0 : i32
    %c0_i32_0 = arith.constant 0 : i32
    %c0_i32_1 = arith.constant 0 : i32
    return %c0_i32, %c0_i32_0 : i32, i32
  }
  func.func @transform_3(%arg0: i32) -> (i32, i32, i32) {
    %c0_i32 = arith.constant 0 : i32
    %c0_i32_0 = arith.constant 0 : i32
    %c0_i32_1 = arith.constant 0 : i32
    %c0_i32_2 = arith.constant 0 : i32
    return %c0_i32, %c0_i32_0, %c0_i32_1 : i32, i32, i32
  }
  func.func @transform_4(%arg0: i32) -> (i32, i32) {
    %c0_i32 = arith.constant 0 : i32
    %c0_i32_0 = arith.constant 0 : i32
    %c0_i32_1 = arith.constant 0 : i32
    return %c0_i32, %c0_i32_0 : i32, i32
  }
  func.func @transform_5(%arg0: i32) -> (i32, i32, i32) {
    %c0_i32 = arith.constant 0 : i32
    %c0_i32_0 = arith.constant 0 : i32
    %c0_i32_1 = arith.constant 0 : i32
    return %arg0, %c0_i32, %c0_i32_0 : i32, i32, i32
  }
  func.func @transform_6(%arg0: i32) -> (i32, i32, i32) {
    %c0_i32 = arith.constant 0 : i32
    %c0_i32_0 = arith.constant 0 : i32
    %c0_i32_1 = arith.constant 0 : i32
    %c0_i32_2 = arith.constant 0 : i32
    return %c0_i32, %c0_i32_0, %c0_i32_1 : i32, i32, i32
  }
  func.func @transform_7(%arg0: i32) -> (i32, i32) {
    %c0_i32 = arith.constant 0 : i32
    %c0_i32_0 = arith.constant 0 : i32
    %c0_i32_1 = arith.constant 0 : i32
    return %c0_i32, %c0_i32_0 : i32, i32
  }
  func.func @transform_8(%arg0: i32) -> (i32, i32, i32) {
    %c0_i32 = arith.constant 0 : i32
    %c0_i32_0 = arith.constant 0 : i32
    %c0_i32_1 = arith.constant 0 : i32
    return %arg0, %c0_i32, %c0_i32_0 : i32, i32, i32
  }
}

</mosaic_0001>

<llo_original>
// kernel: tile.38
$region0: #{tile.38}
  #allocation0 [shape = 's32[1]{0}', space=sflag, size = 0x4, scoped, tag = 'scoped memory for tile.38']
  %s0 = inlined_call_operand.vmem [shape: f32[4], index: 0, kind: input, shape index: {}]
  %s1 = inlined_call_operand.vmem [shape: f32[18,4], index: 1, kind: output, shape index: {}]
  // Predicated region
  $region2: #{tile.38} parent=0 // pred_check
    _
  $region3: #{tile.38} parent=0 // pred_check_branch
    %3 = sbr.rel (0) target = $region5
  $region4: #{tile.38} parent=0 // pred_region
    _
  $region5: #{tile.38} parent=0 // pred_fallthru
    _
  %v4 = vld [vmem:[%s0] ss:$0 sm:$0xff]
  %5 = vst [vmem:[%s1] sm:$0xff] %v4
  %s6 = scalar_lea.vmem %s1, 8
  %7 = vst [vmem:[%s6] sm:$0xff] %v4
  %s8 = scalar_lea.vmem %s1, 16
  %9 = vst [vmem:[%s8] sm:$0xff] %v4

// kernel: resnet_block_2d_forward.4
$region0: #{resnet_block_2d_forward.4}
  #allocation0 [shape = 'u32[]', space=smem, size = 0x4, offset = 0x4, fixed_abs, tag = 'smem constant byte address 0x4 - core index']
  #allocation1 [shape = 'u32[144,128]{1,0:T(1,128)}', space=vmem, size = 0x12000, scoped, tag = 'internal scratch']
  %s0 = inlined_call_operand.vmem [shape: f32[32,64], index: 0, kind: input, shape index: {}]
  %s1 = inlined_call_operand.vmem [shape: f32[1,64], index: 1, kind: output, shape index: {0}]
  %s2 = inlined_call_operand.vmem [shape: f32[1,64], index: 2, kind: output, shape index: {1}]
  %3 = xla_tuple %s1, %s2
  %s4 = sld [smem:[#allocation0]]
  $region49: #{resnet_block_2d_forward.4} parent=0
    _
  %s6 = ssub.s32 1, %s4
  %s7 = scalar_select 0, %s6, %s4
  loop: start=0, step=1, limit=4
  $region2: #{resnet_block_2d_forward.4} parent=0 // loop_pre_header
    _
  $region3: #{resnet_block_2d_forward.4} parent=0 // loop_header
    %s9 = sphi 0, %s13
    %p10 = scmp.ge.s32.totalorder %s9, 4
    %s19 = sphi 0, %s21
    %s22 = sphi 0, %s19
    %s23 = sphi 0, %s22
    %s39 = sphi 0, %s23
    %s43 = sphi 0, %s43
    %s45 = sphi 0, %s43
    %s46 = sphi 0, %s45
    %s60 = sphi 0, %s46
    %s64 = sphi 0, %s64
    %s66 = sphi 0, %s64
    %s67 = sphi 0, %s66
    %s81 = sphi 0, %s67
  $region4: #{resnet_block_2d_forward.4} parent=0 // loop_header_branch
    %12 = sbr.rel (%p10) target = $region8
  $region5: #{resnet_block_2d_forward.4} parent=0 // loop_body
    %s14 = ssub.s32 %s9, 1
    %s15 = ssub.s32 %s9, 2
    %s16 = sadd.s32 %s9, 1
    %s17 = ssub.s32 %s9, %s16
    %p18 = scmp.eq.s32.totalorder %s17, 0
    %s20 = sadd.s32 %s19, 1
    %s21 = scalar_select %p18, %s19, %s20
    %p24 = pneg %p18
    %p25 = scmp.eq.s32.totalorder %s9, 1
    %p26 = por %p24, %p25
    %p27 = scmp.ne.s32.totalorder %s19, %s22
    %p28 = scmp.eq.s32.totalorder %s9, 0
    %p29 = por %p27, %p28
    %p30 = scmp.ne.s32.totalorder %s19, %s22
    %p31 = scmp.eq.s32.totalorder %s14, 1
    %p32 = por %p30, %p31
    %p33 = scmp.ne.s32.totalorder %s22, %s23
    %p34 = scmp.eq.s32.totalorder %s14, 0
    %p35 = por %p33, %p34
    %p36 = scmp.ne.s32.totalorder %s22, %s23
    %p37 = scmp.eq.s32.totalorder %s15, 1
    %p38 = por %p36, %p37
    %p40 = scmp.ne.s32.totalorder %s23, %s39
    %p41 = scmp.eq.s32.totalorder %s15, 0
    %p42 = por %p40, %p41
    %s44 = sadd.s32 %s43, 1
    %p47 = scmp.eq.s32.totalorder %s9, 1
    %p48 = scmp.ne.s32.totalorder %s43, %s45
    %p49 = scmp.eq.s32.totalorder %s9, 0
    %p50 = por %p48, %p49
    %p51 = scmp.ne.s32.totalorder %s43, %s45
    %p52 = scmp.eq.s32.totalorder %s14, 1
    %p53 = por %p51, %p52
    %p54 = scmp.ne.s32.totalorder %s45, %s46
    %p55 = scmp.eq.s32.totalorder %s14, 0
    %p56 = por %p54, %p55
    %p57 = scmp.ne.s32.totalorder %s45, %s46
    %p58 = scmp.eq.s32.totalorder %s15, 1
    %p59 = por %p57, %p58
    %p61 = scmp.ne.s32.totalorder %s46, %s60
    %p62 = scmp.eq.s32.totalorder %s15, 0
    %p63 = por %p61, %p62
    %s65 = sadd.s32 %s64, 1
    %p68 = scmp.eq.s32.totalorder %s9, 1
    %p69 = scmp.ne.s32.totalorder %s64, %s66
    %p70 = scmp.eq.s32.totalorder %s9, 0
    %p71 = por %p69, %p70
    %p72 = scmp.ne.s32.totalorder %s64, %s66
    %p73 = scmp.eq.s32.totalorder %s14, 1
    %p74 = por %p72, %p73
    %p75 = scmp.ne.s32.totalorder %s66, %s67
    %p76 = scmp.eq.s32.totalorder %s14, 0
    %p77 = por %p75, %p76
    %p78 = scmp.ne.s32.totalorder %s66, %s67
    %p79 = scmp.eq.s32.totalorder %s15, 1
    %p80 = por %p78, %p79
    %p82 = scmp.ne.s32.totalorder %s67, %s81
    %p83 = scmp.eq.s32.totalorder %s15, 0
    %p84 = por %p82, %p83
    %p85 = scmp.le.s32.totalorder 1, %s9
    %p86 = scmp.lt.s32.totalorder %s9, 3
    %p87 = pnand %p85, %p86
    %p88 = pneg %p87
    // Predicated region
    $region9: #{resnet_block_2d_forward.4} parent=5 // pred_check
      _
    $region10: #{resnet_block_2d_forward.4} parent=5 // pred_check_branch
      %90 = sbr.rel (%p87) target = $region12
    $region11: #{resnet_block_2d_forward.4} parent=5 // pred_region
      %s91 = ssub.s32 %s9, 1
    $region12: #{resnet_block_2d_forward.4} parent=5 // pred_fallthru
      _
    %p92 = scmp.lt.s32.totalorder %s9, 2
    // Predicated region
    $region13: #{resnet_block_2d_forward.4} parent=5 // pred_check
      %p93 = pneg %p92
    $region14: #{resnet_block_2d_forward.4} parent=5 // pred_check_branch
      %95 = sbr.rel (%p93) target = $region16
    $region15: #{resnet_block_2d_forward.4} parent=5 // pred_region
      // Predicated region
      $region17: #{resnet_block_2d_forward.4} parent=15 // pred_check
        %p96 = pneg %p29
      $region18: #{resnet_block_2d_forward.4} parent=15 // pred_check_branch
        %98 = sbr.rel (%p96) target = $region20
      $region19: #{resnet_block_2d_forward.4} parent=15 // pred_region
        %s99 = smul.u32 2, %s9
        %p100 = scmp.lt.s32.totalorder %s99, 3
        %s101 = scalar_select %p100, %s99, 3
        %s102 = smul.addr %s101, 8
        %s103 = scalar_lea.vmem %s0, %s102
        %s104 = smul.u32 2, %s9
      $region20: #{resnet_block_2d_forward.4} parent=15 // pred_fallthru
        _
    $region16: #{resnet_block_2d_forward.4} parent=5 // pred_fallthru
      _
    %p105 = scmp.le.s32.totalorder 1, %s9
    %p106 = scmp.lt.s32.totalorder %s9, 3
    %p107 = pnand %p105, %p106
    %p108 = pneg %p107
    // Predicated region
    $region21: #{resnet_block_2d_forward.4} parent=5 // pred_check
      _
    $region22: #{resnet_block_2d_forward.4} parent=5 // pred_check_branch
      %110 = sbr.rel (%p107) target = $region24
    $region23: #{resnet_block_2d_forward.4} parent=5 // pred_region
      %s111 = ssub.s32 %s9, 1
      %s112 = smul.u32 2, %s14
      %p113 = scmp.lt.s32.totalorder %s112, 3
      %s114 = scalar_select %p113, %s112, 3
      %s115 = smul.addr %s114, 8
      %s116 = scalar_lea.vmem %s0, %s115
      %p117 = pneg %p35
      %p118 = pneg %p32
      %p119 = pneg %p56
      %p120 = pneg %p53
      %p121 = pneg %p77
      %p122 = pneg %p74
      %s123 = smul.u32 2, %s14
      %p124 = scmp.lt.s32.totalorder %s123, 3
      %s125 = scalar_select %p124, %s123, 3
      %s126 = smul.addr %s125, 8
      %s127 = scalar_lea.vmem %s0, %s126
      %s128 = smul.u32 2, %s14
      %p129 = scmp.eq.s32.totalorder %s14, 0
      // Predicated region
      $region25: #{resnet_block_2d_forward.4} parent=23 // pred_check
        %p130 = pneg %p129
      $region26: #{resnet_block_2d_forward.4} parent=23 // pred_check_branch
        %132 = sbr.rel (%p130) target = $region28
      $region27: #{resnet_block_2d_forward.4} parent=23 // pred_region
        %vm133 = vcmask 516096
        %134 = vst.msk [vmem:[%s1] sm:$0x1] %vm133, 0.0
        %135 = vst.msk [vmem:[%s2] sm:$0x1] %vm133, 0.0
      $region28: #{resnet_block_2d_forward.4} parent=23 // pred_fallthru
        _
      %v136 = vld [vmem:[%s127] sm:$0xff]
      %v137 = vld [vmem:[%s127 + $0x8] sm:$0xff]
      %v138 = vld [vmem:[%s1] sm:$0x1]
      %vm139 = vcmask 523264
      %v140 = vsel %vm139, %v136, 0.0
      %v141 = vsel %vm139, %v137, 0.0
      %v142 = vadd.f32 %v140, %v141
      %v143 = vrot.slane %v142, 4
      %v144 = vadd.f32 %v142, %v143
      %v145 = vrot.slane %v144, 2
      %v146 = vadd.f32 %v144, %v145
      %v147 = vrot.slane %v146, 1
      %v148 = vadd.f32 %v146, %v147
      %v149 = vadd.f32 %v138, %v148
      %vm150 = vcmask 516096
      %151 = vst.msk [vmem:[%s1] sm:$0x1] %vm150, %v149
      %v152 = vld [vmem:[%s2] sm:$0x1]
      %v153 = vmul.f32 %v136, %v136
      %v154 = vmul.f32 %v137, %v137
      %v155 = vsel %vm139, %v153, 0.0
      %v156 = vsel %vm139, %v154, 0.0
      %v157 = vadd.f32 %v155, %v156
      %v158 = vrot.slane %v157, 4
      %v159 = vadd.f32 %v157, %v158
      %v160 = vrot.slane %v159, 2
      %v161 = vadd.f32 %v159, %v160
      %v162 = vrot.slane %v161, 1
      %v163 = vadd.f32 %v161, %v162
      %v164 = vadd.f32 %v152, %v163
      %165 = vst.msk [vmem:[%s2] sm:$0x1] %vm150, %v164
      // Predicated region
      $region29: #{resnet_block_2d_forward.4} parent=23 // pred_check
        %p166 = pneg %p53
      $region30: #{resnet_block_2d_forward.4} parent=23 // pred_check_branch
        %168 = sbr.rel (%p166) target = $region32
      $region31: #{resnet_block_2d_forward.4} parent=23 // pred_region
        _
      $region32: #{resnet_block_2d_forward.4} parent=23 // pred_fallthru
        _
      // Predicated region
      $region33: #{resnet_block_2d_forward.4} parent=23 // pred_check
        %p169 = pneg %p74
      $region34: #{resnet_block_2d_forward.4} parent=23 // pred_check_branch
        %171 = sbr.rel (%p169) target = $region36
      $region35: #{resnet_block_2d_forward.4} parent=23 // pred_region
        _
      $region36: #{resnet_block_2d_forward.4} parent=23 // pred_fallthru
        _
      // Predicated region
      $region37: #{resnet_block_2d_forward.4} parent=23 // pred_check
        %p172 = pneg %p53
      $region38: #{resnet_block_2d_forward.4} parent=23 // pred_check_branch
        %174 = sbr.rel (%p172) target = $region40
      $region39: #{resnet_block_2d_forward.4} parent=23 // pred_region
        _
      $region40: #{resnet_block_2d_forward.4} parent=23 // pred_fallthru
        _
      // Predicated region
      $region41: #{resnet_block_2d_forward.4} parent=23 // pred_check
        %p175 = pneg %p74
      $region42: #{resnet_block_2d_forward.4} parent=23 // pred_check_branch
        %177 = sbr.rel (%p175) target = $region44
      $region43: #{resnet_block_2d_forward.4} parent=23 // pred_region
        _
      $region44: #{resnet_block_2d_forward.4} parent=23 // pred_fallthru
        _
    $region24: #{resnet_block_2d_forward.4} parent=5 // pred_fallthru
      _
    %p178 = scmp.le.s32.totalorder 2, %s9
    // Predicated region
    $region45: #{resnet_block_2d_forward.4} parent=5 // pred_check
      %p179 = pneg %p178
    $region46: #{resnet_block_2d_forward.4} parent=5 // pred_check_branch
      %181 = sbr.rel (%p179) target = $region48
    $region47: #{resnet_block_2d_forward.4} parent=5 // pred_region
      %s182 = ssub.s32 %s9, 2
    $region48: #{resnet_block_2d_forward.4} parent=5 // pred_fallthru
      _
  $region6: #{resnet_block_2d_forward.4} parent=0 // loop_footer
    %s13 = sadd.s32 1, %s9
  $region7: #{resnet_block_2d_forward.4} parent=0 // loop_footer_branch
    %8 = sbr.rel target = $region3
  $region8: #{resnet_block_2d_forward.4} parent=0 // loop_exit
    _

// kernel: tile.48
$region0: #{tile.48}
  #allocation0 [shape = 's32[1]{0}', space=sflag, size = 0x4, scoped, tag = 'scoped memory for tile.48']
  %s0 = inlined_call_operand.vmem [shape: f32[8], index: 0, kind: input, shape index: {}]
  %s1 = inlined_call_operand.vmem [shape: f32[16,8], index: 1, kind: output, shape index: {}]
  // Predicated region
  $region2: #{tile.48} parent=0 // pred_check
    _
  $region3: #{tile.48} parent=0 // pred_check_branch
    %3 = sbr.rel (0) target = $region5
  $region4: #{tile.48} parent=0 // pred_region
    _
  $region5: #{tile.48} parent=0 // pred_fallthru
    _
  %v4 = vld [vmem:[%s0] ss:$0 sm:$0xff]
  %5 = vst [vmem:[%s1] sm:$0xff] %v4
  %s6 = scalar_lea.vmem %s1, 8
  %7 = vst [vmem:[%s6] sm:$0xff] %v4

// kernel: tile.49
$region0: #{tile.49}
  %s0 = inlined_call_operand.vmem [shape: f32[16,8], index: 0, kind: input, shape index: {}]
  %s1 = inlined_call_operand.vmem [shape: f32[1,128], index: 1, kind: output, shape index: {}]
  $region1: #{tile.49} parent=0
    #allocation0 [shape = 'u8[4096]{0}', space=vmem, size = 0x1000, scoped, tag = 'scoped mem for output reshape']
    %v2 = vld [vmem:[%s0] sm:$0x1]
    %vm3 = vcmask 64512
    %4 = vst.msk [vmem:[#allocation0] sm:$0x1] %vm3, %v2
    %s5 = scalar_lea.vmem %s0, 15
    %v6 = vld [vmem:[%s5] sm:$0x1]
    %7 = vrot.lane.b32.xlu0 %v6, 120
    %v8 = vpop.permute.xlu0 %7
    %vm9 = vcmask 1048512
    %10 = vst.msk [vmem:[#allocation0] sm:$0x1] %vm9, %v8
    %s11 = scalar_lea.vmem %s0, 14
    %v12 = vld [vmem:[%s11] sm:$0x1]
    %13 = vrot.lane.b32.xlu0 %v12, 112
    %v14 = vpop.permute.xlu0 %13
    %vm15 = vcmask 982912
    %16 = vst.msk [vmem:[#allocation0] sm:$0x1] %vm15, %v14
    %s17 = scalar_lea.vmem %s0, 13
    %v18 = vld [vmem:[%s17] sm:$0x1]
    %19 = vrot.lane.b32.xlu0 %v18, 104
    %v20 = vpop.permute.xlu0 %19
    %vm21 = vcmask 917312
    %22 = vst.msk [vmem:[#allocation0] sm:$0x1] %vm21, %v20
    %s23 = scalar_lea.vmem %s0, 12
    %v24 = vld [vmem:[%s23] sm:$0x1]
    %25 = vrot.lane.b32.xlu0 %v24, 96
    %v26 = vpop.permute.xlu0 %25
    %vm27 = vcmask 851712
    %28 = vst.msk [vmem:[#allocation0] sm:$0x1] %vm27, %v26
    %s29 = scalar_lea.vmem %s0, 11
    %v30 = vld [vmem:[%s29] sm:$0x1]
    %31 = vrot.lane.b32.xlu0 %v30, 88
    %v32 = vpop.permute.xlu0 %31
    %vm33 = vcmask 786112
    %34 = vst.msk [vmem:[#allocation0] sm:$0x1] %vm33, %v32
    %s35 = scalar_lea.vmem %s0, 10
    %v36 = vld [vmem:[%s35] sm:$0x1]
    %37 = vrot.lane.b32.xlu0 %v36, 80
    %v38 = vpop.permute.xlu0 %37
    %vm39 = vcmask 720512
    %40 = vst.msk [vmem:[#allocation0] sm:$0x1] %vm39, %v38
    %s41 = scalar_lea.vmem %s0, 9
    %v42 = vld [vmem:[%s41] sm:$0x1]
    %43 = vrot.lane.b32.xlu0 %v42, 72
    %v44 = vpop.permute.xlu0 %43
    %vm45 = vcmask 654912
    %46 = vst.msk [vmem:[#allocation0] sm:$0x1] %vm45, %v44
    %s47 = scalar_lea.vmem %s0, 8
    %v48 = vld [vmem:[%s47] sm:$0x1]
    %49 = vrot.lane.b32.xlu0 %v48, 64
    %v50 = vpop.permute.xlu0 %49
    %vm51 = vcmask 589312
    %52 = vst.msk [vmem:[#allocation0] sm:$0x1] %vm51, %v50
    %s53 = scalar_lea.vmem %s0, 7
    %v54 = vld [vmem:[%s53] sm:$0x1]
    %55 = vrot.lane.b32.xlu0 %v54, 56
    %v56 = vpop.permute.xlu0 %55
    %vm57 = vcmask 523712
    %58 = vst.msk [vmem:[#allocation0] sm:$0x1] %vm57, %v56
    %s59 = scalar_lea.vmem %s0, 6
    %v60 = vld [vmem:[%s59] sm:$0x1]
    %61 = vrot.lane.b32.xlu0 %v60, 48
    %v62 = vpop.permute.xlu0 %61
    %vm63 = vcmask 458112
    %64 = vst.msk [vmem:[#allocation0] sm:$0x1] %vm63, %v62
    %s65 = scalar_lea.vmem %s0, 5
    %v66 = vld [vmem:[%s65] sm:$0x1]
    %67 = vrot.lane.b32.xlu0 %v66, 40
    %v68 = vpop.permute.xlu0 %67
    %vm69 = vcmask 392512
    %70 = vst.msk [vmem:[#allocation0] sm:$0x1] %vm69, %v68
    %s71 = scalar_lea.vmem %s0, 4
    %v72 = vld [vmem:[%s71] sm:$0x1]
    %73 = vrot.lane.b32.xlu0 %v72, 32
    %v74 = vpop.permute.xlu0 %73
    %vm75 = vcmask 326912
    %76 = vst.msk [vmem:[#allocation0] sm:$0x1] %vm75, %v74
    %s77 = scalar_lea.vmem %s0, 3
    %v78 = vld [vmem:[%s77] sm:$0x1]
    %79 = vrot.lane.b32.xlu0 %v78, 24
    %v80 = vpop.permute.xlu0 %79
    %vm81 = vcmask 261312
    %82 = vst.msk [vmem:[#allocation0] sm:$0x1] %vm81, %v80
    %s83 = scalar_lea.vmem %s0, 2
    %v84 = vld [vmem:[%s83] sm:$0x1]
    %85 = vrot.lane.b32.xlu0 %v84, 16
    %v86 = vpop.permute.xlu0 %85
    %vm87 = vcmask 195712
    %88 = vst.msk [vmem:[#allocation0] sm:$0x1] %vm87, %v86
    %s89 = scalar_lea.vmem %s0, 1
    %v90 = vld [vmem:[%s89] sm:$0x1]
    %91 = vrot.lane.b32.xlu0 %v90, 8
    %v92 = vpop.permute.xlu0 %91
    %vm93 = vcmask 130112
    %94 = vst.msk [vmem:[#allocation0] sm:$0x1] %vm93, %v92
    %s96 = sshllo.u32 0, 1
    %v98 = vld [vmem:[#allocation0] sm:%s96]
    %s99 = sshllo.u32 0, 1
    %100 = vst [vmem:[%s1] sm:%s99] %v98

// kernel: resnet_block_2d_forward.5
$region0: #{resnet_block_2d_forward.5}
  #allocation0 [shape = 'u32[]', space=smem, size = 0x4, offset = 0x4, fixed_abs, tag = 'smem constant byte address 0x4 - core index']
  #allocation1 [shape = 'u32[144,128]{1,0:T(1,128)}', space=vmem, size = 0x12000, scoped, tag = 'internal scratch']
  %s0 = inlined_call_operand.vmem [shape: f32[2,18,72], index: 0, kind: input, shape index: {}]
  %s1 = inlined_call_operand.vmem [shape: f32[18,72], index: 1, kind: input, shape index: {}]
  %s2 = inlined_call_operand.vmem [shape: f32[18,72], index: 2, kind: input, shape index: {}]
  %s3 = inlined_call_operand.vmem [shape: f32[3,72,128], index: 3, kind: input, shape index: {}]
  %s4 = inlined_call_operand.vmem [shape: f32[1,128], index: 4, kind: input, shape index: {}]
  %s5 = inlined_call_operand.vmem [shape: f32[2,16,128], index: 5, kind: output, shape index: {}]
  %s6 = sld [smem:[#allocation0]]
  $region53: #{resnet_block_2d_forward.5} parent=0
    _
  %s8 = ssub.s32 1, %s6
  %s9 = scalar_select 0, %s8, %s6
  loop: start=0, step=1, limit=4
  $region2: #{resnet_block_2d_forward.5} parent=0 // loop_pre_header
    _
  $region3: #{resnet_block_2d_forward.5} parent=0 // loop_header
    %s11 = sphi 0, %s15
    %p12 = scmp.ge.s32.totalorder %s11, 4
    %s21 = sphi 0, %s23
    %s24 = sphi 0, %s21
    %s25 = sphi 0, %s24
    %s41 = sphi 0, %s25
    %s45 = sphi 0, %s45
    %s47 = sphi 0, %s45
    %s48 = sphi 0, %s47
    %s62 = sphi 0, %s48
    %s66 = sphi 0, %s66
    %s68 = sphi 0, %s66
    %s69 = sphi 0, %s68
    %s83 = sphi 0, %s69
    %s87 = sphi 0, %s87
    %s89 = sphi 0, %s87
    %s90 = sphi 0, %s89
    %s104 = sphi 0, %s90
    %s108 = sphi 0, %s108
    %s110 = sphi 0, %s108
    %s111 = sphi 0, %s110
    %s125 = sphi 0, %s111
    %s131 = sphi 0, %s133
    %s134 = sphi 0, %s131
    %s135 = sphi 0, %s134
    %s151 = sphi 0, %s135
  $region4: #{resnet_block_2d_forward.5} parent=0 // loop_header_branch
    %14 = sbr.rel (%p12) target = $region8
  $region5: #{resnet_block_2d_forward.5} parent=0 // loop_body
    %s16 = ssub.s32 %s11, 1
    %s17 = ssub.s32 %s11, 2
    %s18 = sadd.s32 %s11, 1
    %s19 = ssub.s32 %s11, %s18
    %p20 = scmp.eq.s32.totalorder %s19, 0
    %s22 = sadd.s32 %s21, 1
    %s23 = scalar_select %p20, %s21, %s22
    %p26 = pneg %p20
    %p27 = scmp.eq.s32.totalorder %s11, 1
    %p28 = por %p26, %p27
    %p29 = scmp.ne.s32.totalorder %s21, %s24
    %p30 = scmp.eq.s32.totalorder %s11, 0
    %p31 = por %p29, %p30
    %p32 = scmp.ne.s32.totalorder %s21, %s24
    %p33 = scmp.eq.s32.totalorder %s16, 1
    %p34 = por %p32, %p33
    %p35 = scmp.ne.s32.totalorder %s24, %s25
    %p36 = scmp.eq.s32.totalorder %s16, 0
    %p37 = por %p35, %p36
    %p38 = scmp.ne.s32.totalorder %s24, %s25
    %p39 = scmp.eq.s32.totalorder %s17, 1
    %p40 = por %p38, %p39
    %p42 = scmp.ne.s32.totalorder %s25, %s41
    %p43 = scmp.eq.s32.totalorder %s17, 0
    %p44 = por %p42, %p43
    %s46 = sadd.s32 %s45, 1
    %p49 = scmp.eq.s32.totalorder %s11, 1
    %p50 = scmp.ne.s32.totalorder %s45, %s47
    %p51 = scmp.eq.s32.totalorder %s11, 0
    %p52 = por %p50, %p51
    %p53 = scmp.ne.s32.totalorder %s45, %s47
    %p54 = scmp.eq.s32.totalorder %s16, 1
    %p55 = por %p53, %p54
    %p56 = scmp.ne.s32.totalorder %s47, %s48
    %p57 = scmp.eq.s32.totalorder %s16, 0
    %p58 = por %p56, %p57
    %p59 = scmp.ne.s32.totalorder %s47, %s48
    %p60 = scmp.eq.s32.totalorder %s17, 1
    %p61 = por %p59, %p60
    %p63 = scmp.ne.s32.totalorder %s48, %s62
    %p64 = scmp.eq.s32.totalorder %s17, 0
    %p65 = por %p63, %p64
    %s67 = sadd.s32 %s66, 1
    %p70 = scmp.eq.s32.totalorder %s11, 1
    %p71 = scmp.ne.s32.totalorder %s66, %s68
    %p72 = scmp.eq.s32.totalorder %s11, 0
    %p73 = por %p71, %p72
    %p74 = scmp.ne.s32.totalorder %s66, %s68
    %p75 = scmp.eq.s32.totalorder %s16, 1
    %p76 = por %p74, %p75
    %p77 = scmp.ne.s32.totalorder %s68, %s69
    %p78 = scmp.eq.s32.totalorder %s16, 0
    %p79 = por %p77, %p78
    %p80 = scmp.ne.s32.totalorder %s68, %s69
    %p81 = scmp.eq.s32.totalorder %s17, 1
    %p82 = por %p80, %p81
    %p84 = scmp.ne.s32.totalorder %s69, %s83
    %p85 = scmp.eq.s32.totalorder %s17, 0
    %p86 = por %p84, %p85
    %s88 = sadd.s32 %s87, 1
    %p91 = scmp.eq.s32.totalorder %s11, 1
    %p92 = scmp.ne.s32.totalorder %s87, %s89
    %p93 = scmp.eq.s32.totalorder %s11, 0
    %p94 = por %p92, %p93
    %p95 = scmp.ne.s32.totalorder %s87, %s89
    %p96 = scmp.eq.s32.totalorder %s16, 1
    %p97 = por %p95, %p96
    %p98 = scmp.ne.s32.totalorder %s89, %s90
    %p99 = scmp.eq.s32.totalorder %s16, 0
    %p100 = por %p98, %p99
    %p101 = scmp.ne.s32.totalorder %s89, %s90
    %p102 = scmp.eq.s32.totalorder %s17, 1
    %p103 = por %p101, %p102
    %p105 = scmp.ne.s32.totalorder %s90, %s104
    %p106 = scmp.eq.s32.totalorder %s17, 0
    %p107 = por %p105, %p106
    %s109 = sadd.s32 %s108, 1
    %p112 = scmp.eq.s32.totalorder %s11, 1
    %p113 = scmp.ne.s32.totalorder %s108, %s110
    %p114 = scmp.eq.s32.totalorder %s11, 0
    %p115 = por %p113, %p114
    %p116 = scmp.ne.s32.totalorder %s108, %s110
    %p117 = scmp.eq.s32.totalorder %s16, 1
    %p118 = por %p116, %p117
    %p119 = scmp.ne.s32.totalorder %s110, %s111
    %p120 = scmp.eq.s32.totalorder %s16, 0
    %p121 = por %p119, %p120
    %p122 = scmp.ne.s32.totalorder %s110, %s111
    %p123 = scmp.eq.s32.totalorder %s17, 1
    %p124 = por %p122, %p123
    %p126 = scmp.ne.s32.totalorder %s111, %s125
    %p127 = scmp.eq.s32.totalorder %s17, 0
    %p128 = por %p126, %p127
    %s129 = ssub.s32 %s11, %s18
    %p130 = scmp.eq.s32.totalorder %s129, 0
    %s132 = sadd.s32 %s131, 1
    %s133 = scalar_select %p130, %s131, %s132
    %p136 = pneg %p130
    %p137 = scmp.eq.s32.totalorder %s11, 1
    %p138 = por %p136, %p137
    %p139 = scmp.ne.s32.totalorder %s131, %s134
    %p140 = scmp.eq.s32.totalorder %s11, 0
    %p141 = por %p139, %p140
    %p142 = scmp.ne.s32.totalorder %s131, %s134
    %p143 = scmp.eq.s32.totalorder %s16, 1
    %p144 = por %p142, %p143
    %p145 = scmp.ne.s32.totalorder %s134, %s135
    %p146 = scmp.eq.s32.totalorder %s16, 0
    %p147 = por %p145, %p146
    %p148 = scmp.ne.s32.totalorder %s134, %s135
    %p149 = scmp.eq.s32.totalorder %s17, 1
    %p150 = por %p148, %p149
    %p152 = scmp.ne.s32.totalorder %s135, %s151
    %p153 = scmp.eq.s32.totalorder %s17, 0
    %p154 = por %p152, %p153
    %p155 = scmp.le.s32.totalorder 1, %s11
    %p156 = scmp.lt.s32.totalorder %s11, 3
    %p157 = pnand %p155, %p156
    %p158 = pneg %p157
    // Predicated region
    $region9: #{resnet_block_2d_forward.5} parent=5 // pred_check
      _
    $region10: #{resnet_block_2d_forward.5} parent=5 // pred_check_branch
      %160 = sbr.rel (%p157) target = $region12
    $region11: #{resnet_block_2d_forward.5} parent=5 // pred_region
      %s161 = ssub.s32 %s11, 1
      // Predicated region
      $region13: #{resnet_block_2d_forward.5} parent=11 // pred_check
        %p162 = pneg %p58
      $region14: #{resnet_block_2d_forward.5} parent=11 // pred_check_branch
        %164 = sbr.rel (%p162) target = $region16
      $region15: #{resnet_block_2d_forward.5} parent=11 // pred_region
        _
      $region16: #{resnet_block_2d_forward.5} parent=11 // pred_fallthru
        _
      // Predicated region
      $region17: #{resnet_block_2d_forward.5} parent=11 // pred_check
        %p165 = pneg %p79
      $region18: #{resnet_block_2d_forward.5} parent=11 // pred_check_branch
        %167 = sbr.rel (%p165) target = $region20
      $region19: #{resnet_block_2d_forward.5} parent=11 // pred_region
        _
      $region20: #{resnet_block_2d_forward.5} parent=11 // pred_fallthru
        _
      // Predicated region
      $region21: #{resnet_block_2d_forward.5} parent=11 // pred_check
        %p168 = pneg %p100
      $region22: #{resnet_block_2d_forward.5} parent=11 // pred_check_branch
        %170 = sbr.rel (%p168) target = $region24
      $region23: #{resnet_block_2d_forward.5} parent=11 // pred_region
        _
      $region24: #{resnet_block_2d_forward.5} parent=11 // pred_fallthru
        _
      // Predicated region
      $region25: #{resnet_block_2d_forward.5} parent=11 // pred_check
        %p171 = pneg %p121
      $region26: #{resnet_block_2d_forward.5} parent=11 // pred_check_branch
        %173 = sbr.rel (%p171) target = $region28
      $region27: #{resnet_block_2d_forward.5} parent=11 // pred_region
        _
      $region28: #{resnet_block_2d_forward.5} parent=11 // pred_fallthru
        _
    $region12: #{resnet_block_2d_forward.5} parent=5 // pred_fallthru
      _
    %p174 = scmp.lt.s32.totalorder %s11, 2
    // Predicated region
    $region29: #{resnet_block_2d_forward.5} parent=5 // pred_check
      %p175 = pneg %p174
    $region30: #{resnet_block_2d_forward.5} parent=5 // pred_check_branch
      %177 = sbr.rel (%p175) target = $region32
    $region31: #{resnet_block_2d_forward.5} parent=5 // pred_region
      // Predicated region
      $region33: #{resnet_block_2d_forward.5} parent=31 // pred_check
        %p178 = pneg %p31
      $region34: #{resnet_block_2d_forward.5} parent=31 // pred_check_branch
        %180 = sbr.rel (%p178) target = $region36
      $region35: #{resnet_block_2d_forward.5} parent=31 // pred_region
        %p181 = scmp.lt.s32.totalorder %s11, 1
        %s182 = scalar_select %p181, %s11, 1
        %s183 = smul.addr %s182, 3
        %s184 = smul.addr %s183, 8
        %s185 = scalar_lea.vmem %s0, %s184
      $region36: #{resnet_block_2d_forward.5} parent=31 // pred_fallthru
        _
    $region32: #{resnet_block_2d_forward.5} parent=5 // pred_fallthru
      _
    %p186 = scmp.le.s32.totalorder 1, %s11
    %p187 = scmp.lt.s32.totalorder %s11, 3
    %p188 = pnand %p186, %p187
    %p189 = pneg %p188
    // Predicated region
    $region37: #{resnet_block_2d_forward.5} parent=5 // pred_check
      _
    $region38: #{resnet_block_2d_forward.5} parent=5 // pred_check_branch
      %191 = sbr.rel (%p188) target = $region40
    $region39: #{resnet_block_2d_forward.5} parent=5 // pred_region
      %s192 = ssub.s32 %s11, 1
      %p193 = scmp.lt.s32.totalorder %s16, 1
      %s194 = scalar_select %p193, %s16, 1
      %s195 = smul.addr %s194, 3
      %s196 = smul.addr %s195, 8
      %s197 = scalar_lea.vmem %s0, %s196
      %p198 = pneg %p37
      %p199 = pneg %p34
      %p200 = pneg %p58
      %p201 = pneg %p55
      %p202 = pneg %p79
      %p203 = pneg %p76
      %p204 = pneg %p100
      %p205 = pneg %p97
      %p206 = pneg %p121
      %p207 = pneg %p118
      %p208 = pneg %p147
      %p209 = pneg %p144
      %p210 = scmp.lt.s32.totalorder %s16, 1
      %s211 = scalar_select %p210, %s16, 1
      %s212 = smul.addr %s211, 2
      %s213 = smul.addr %s212, 8
      %s214 = scalar_lea.vmem %s5, %s213
      %p215 = scmp.lt.s32.totalorder %s16, 1
      %s216 = scalar_select %p215, %s16, 1
      %s217 = smul.addr %s216, 3
      %s218 = smul.addr %s217, 8
      %s219 = scalar_lea.vmem %s0, %s218
      %p220 = scmp.lt.s32.totalorder %s16, 1
      %s221 = scalar_select %p220, %s16, 1
      %s222 = smul.addr %s221, 2
      %s223 = smul.addr %s222, 8
      %s224 = scalar_lea.vmem %s5, %s223
      %v225 = vld [vmem:[%s219] sm:$0xff]
      %v226 = vld [vmem:[%s219 + $0x8] sm:$0xff]
      %v227 = vld [vmem:[%s219 + $0x10] sm:$0x3]
      %v228 = vld [vmem:[%s1] sm:$0xff]
      %v229 = vld [vmem:[%s1 + $0x8] sm:$0xff]
      %v230 = vld [vmem:[%s1 + $0x10] sm:$0x3]
      %v231 = vmul.f32 %v225, %v228
      %v232 = vmul.f32 %v226, %v229
      %v233 = vmul.f32 %v227, %v230
      %v234 = vld [vmem:[%s2] sm:$0xff]
      %v235 = vld [vmem:[%s2 + $0x8] sm:$0xff]
      %v236 = vld [vmem:[%s2 + $0x10] sm:$0x3]
      %v237 = vadd.f32 %v231, %v234
      %v238 = vadd.f32 %v232, %v235
      %v239 = vadd.f32 %v233, %v236
      %v240 = vld [vmem:[%s3] sm:$0xff]
      %v241 = vld [vmem:[%s3 + $0x8] sm:$0xff]
      %v242 = vld [vmem:[%s3 + $0x10] sm:$0xff]
      %v243 = vld [vmem:[%s3 + $0x18] sm:$0xff]
      %v244 = vld [vmem:[%s3 + $0x20] sm:$0xff]
      %v245 = vld [vmem:[%s3 + $0x28] sm:$0xff]
      %v246 = vld [vmem:[%s3 + $0x30] sm:$0xff]
      %v247 = vld [vmem:[%s3 + $0x38] sm:$0xff]
      %v248 = vld [vmem:[%s3 + $0x40] sm:$0xff]
      %s249 = scalar_lea.vmem %s3, 72
      %v250 = vld [vmem:[%s249] sm:$0xff]
      %v251 = vld [vmem:[%s249 + $0x8] sm:$0xff]
      %v252 = vld [vmem:[%s249 + $0x10] sm:$0xff]
      %v253 = vld [vmem:[%s249 + $0x18] sm:$0xff]
      %v254 = vld [vmem:[%s249 + $0x20] sm:$0xff]
      %v255 = vld [vmem:[%s249 + $0x28] sm:$0xff]
      %v256 = vld [vmem:[%s249 + $0x30] sm:$0xff]
      %v257 = vld [vmem:[%s249 + $0x38] sm:$0xff]
      %v258 = vld [vmem:[%s249 + $0x40] sm:$0xff]
      %vm262 = vcmask 1046528
      %v263 = vrot.slane %v237, 1
      %v264 = vrot.slane %v238, 1
      %v265 = vsel %vm262, %v263, %v264
      %v266 = vrot.slane %v239, 1
      %v267 = vsel %vm262, %v264, %v266
      %vm268 = vcmask 588800
      %v269 = vsel %vm268, %v265, 0
      %v271 = vsel %vm268, %v267, 0
      %273 = vmatprep.subr.mxu0 0.0
      %274 = vmatpush1.msra.mxu0 %v250
      %275 = vmatprep.subr.mxu0 0.0
      %276 = vmatpush1.msra.mxu0 %v251
      %277 = vmatprep.subr.mxu0 0.0
      %278 = vmatpush1.msra.mxu0 %v252
      %279 = vmatprep.subr.mxu0 0.0
      %280 = vmatpush1.msra.mxu0 %v253
      %281 = vmatprep.subr.mxu0 0.0
      %282 = vmatpush1.msra.mxu0 %v254
      %283 = vmatprep.subr.mxu0 0.0
      %284 = vmatpush1.msra.mxu0 %v255
      %285 = vmatprep.subr.mxu0 0.0
      %286 = vmatpush1.msra.mxu0 %v256
      %287 = vmatprep.subr.mxu0 0.0
      %288 = vmatpush1.msra.mxu0 %v257
      %289 = vmatprep.subr.mxu0 0.0
      %290 = vmatpush1.msra.mxu0 %v258
      %291 = vmatprep.subr.mxu0 0.0
      %292 = vmatpush1.msra.mxu0 0.0
      %293 = vmatprep.subr.mxu0 0.0
      %294 = vmatpush1.msra.mxu0 0.0
      %295 = vmatprep.subr.mxu0 0.0
      %296 = vmatpush1.msra.mxu0 0.0
      %297 = vmatprep.subr.mxu0 0.0
      %298 = vmatpush1.msra.mxu0 0.0
      %299 = vmatprep.subr.mxu0 0.0
      %300 = vmatpush1.msra.mxu0 0.0
      %301 = vmatprep.subr.mxu0 0.0
      %302 = vmatpush1.msra.mxu0 0.0
      %303 = vmatprep.subr.mxu0 0.0
      %304 = vmatpush1.msra.mxu0 0.0
      %305 = vmatprep.subr.mxu0 0.0
      %306 = vmatpush1.msra.mxu0 0.0
      %307 = vmatprep.subr.mxu0 0.0
      %308 = vmatpush1.msra.mxu0 0.0
      %309 = vmatprep.subr.mxu0 0.0
      %310 = vmatpush1.msra.mxu0 0.0
      %311 = vmatprep.subr.mxu0 0.0
      %312 = vmatpush1.msra.mxu0 0.0
      %313 = vmatprep.subr.mxu0 0.0
      %314 = vmatpush1.msra.mxu0 0.0
      %315 = vmatprep.subr.mxu0 0.0
      %316 = vmatpush1.msra.mxu0 0.0
      %317 = vmatprep.subr.mxu0 0.0
      %318 = vmatpush1.msra.mxu0 0.0
      %319 = vmatprep.subr.mxu0 0.0
      %320 = vmatpush1.msra.mxu0 0.0
      %321 = vmatprep.subr.mxu0 0.0
      %322 = vmatpush1.msra.mxu0 0.0
      %323 = vmatprep.subr.mxu0 0.0
      %324 = vmatpush1.msra.mxu0 0.0
      %325 = vmatprep.subr.mxu0 0.0
      %326 = vmatpush1.msra.mxu0 0.0
      %327 = vmatprep.subr.mxu0 0.0
      %328 = vmatpush1.msra.mxu0 0.0
      %329 = vmatprep.subr.mxu0 0.0
      %330 = vmatpush1.msra.mxu0 0.0
      %331 = vmatprep.subr.mxu0 0.0
      %332 = vmatpush1.msra.mxu0 0.0
      %333 = vmatprep.subr.mxu0 0.0
      %334 = vmatpush1.msra.mxu0 0.0
      %335 = vmatprep.subr.mxu0 0.0
      %336 = vmatpush1.msra.mxu0 0.0
      %337 = vmatprep.mubr.f32.mxu0 0.0
      %338 = vmatmul.mubr.f32.gmra.mrb[0].mxu0 %v269
      %v339 = vpop.f32.mrb[0].mxu0
      %v340 = vadd.f32 0.0, %v339
      %v341 = vpop.f32.mrb[0].mxu0
      %342 = vmatprep.mubr.f32.mxu0 0.0
      %343 = vmatmul.mubr.f32.gmra.mrb[0].mxu0 %v271
      %v344 = vpop.f32.mrb[0].mxu0
      %v345 = vadd.f32 0.0, %v344
      %v346 = vpop.f32.mrb[0].mxu0
      %347 = vdwg.mxu0
      %v348 = vsel %vm268, %v237, 0
      %v350 = vsel %vm268, %v238, 0
      %352 = vmatprep.subr.mxu0 0.0
      %353 = vmatpush1.msra.mxu0 %v240
      %354 = vmatprep.subr.mxu0 0.0
      %355 = vmatpush1.msra.mxu0 %v241
      %356 = vmatprep.subr.mxu0 0.0
      %357 = vmatpush1.msra.mxu0 %v242
      %358 = vmatprep.subr.mxu0 0.0
      %359 = vmatpush1.msra.mxu0 %v243
      %360 = vmatprep.subr.mxu0 0.0
      %361 = vmatpush1.msra.mxu0 %v244
      %362 = vmatprep.subr.mxu0 0.0
      %363 = vmatpush1.msra.mxu0 %v245
      %364 = vmatprep.subr.mxu0 0.0
      %365 = vmatpush1.msra.mxu0 %v246
      %366 = vmatprep.subr.mxu0 0.0
      %367 = vmatpush1.msra.mxu0 %v247
      %368 = vmatprep.subr.mxu0 0.0
      %369 = vmatpush1.msra.mxu0 %v248
      %370 = vmatprep.subr.mxu0 0.0
      %371 = vmatpush1.msra.mxu0 0.0
      %372 = vmatprep.subr.mxu0 0.0
      %373 = vmatpush1.msra.mxu0 0.0
      %374 = vmatprep.subr.mxu0 0.0
      %375 = vmatpush1.msra.mxu0 0.0
      %376 = vmatprep.subr.mxu0 0.0
      %377 = vmatpush1.msra.mxu0 0.0
      %378 = vmatprep.subr.mxu0 0.0
      %379 = vmatpush1.msra.mxu0 0.0
      %380 = vmatprep.subr.mxu0 0.0
      %381 = vmatpush1.msra.mxu0 0.0
      %382 = vmatprep.subr.mxu0 0.0
      %383 = vmatpush1.msra.mxu0 0.0
      %384 = vmatprep.subr.mxu0 0.0
      %385 = vmatpush1.msra.mxu0 0.0
      %386 = vmatprep.subr.mxu0 0.0
      %387 = vmatpush1.msra.mxu0 0.0
      %388 = vmatprep.subr.mxu0 0.0
      %389 = vmatpush1.msra.mxu0 0.0
      %390 = vmatprep.subr.mxu0 0.0
      %391 = vmatpush1.msra.mxu0 0.0
      %392 = vmatprep.subr.mxu0 0.0
      %393 = vmatpush1.msra.mxu0 0.0
      %394 = vmatprep.subr.mxu0 0.0
      %395 = vmatpush1.msra.mxu0 0.0
      %396 = vmatprep.subr.mxu0 0.0
      %397 = vmatpush1.msra.mxu0 0.0
      %398 = vmatprep.subr.mxu0 0.0
      %399 = vmatpush1.msra.mxu0 0.0
      %400 = vmatprep.subr.mxu0 0.0
      %401 = vmatpush1.msra.mxu0 0.0
      %402 = vmatprep.subr.mxu0 0.0
      %403 = vmatpush1.msra.mxu0 0.0
      %404 = vmatprep.subr.mxu0 0.0
      %405 = vmatpush1.msra.mxu0 0.0
      %406 = vmatprep.subr.mxu0 0.0
      %407 = vmatpush1.msra.mxu0 0.0
      %408 = vmatprep.subr.mxu0 0.0
      %409 = vmatpush1.msra.mxu0 0.0
      %410 = vmatprep.subr.mxu0 0.0
      %411 = vmatpush1.msra.mxu0 0.0
      %412 = vmatprep.subr.mxu0 0.0
      %413 = vmatpush1.msra.mxu0 0.0
      %414 = vmatprep.subr.mxu0 0.0
      %415 = vmatpush1.msra.mxu0 0.0
      %416 = vmatprep.mubr.f32.mxu0 0.0
      %417 = vmatmul.mubr.f32.gmra.mrb[0].mxu0 %v348
      %v418 = vpop.f32.mrb[0].mxu0
      %v419 = vadd.f32 %v340, %v418
      %v420 = vpop.f32.mrb[0].mxu0
      %421 = vmatprep.mubr.f32.mxu0 0.0
      %422 = vmatmul.mubr.f32.gmra.mrb[0].mxu0 %v350
      %v423 = vpop.f32.mrb[0].mxu0
      %v424 = vadd.f32 %v345, %v423
      %v425 = vpop.f32.mrb[0].mxu0
      %426 = vdwg.mxu0
      %s427 = scalar_lea.vmem %s3, 144
      %v428 = vld [vmem:[%s427] sm:$0xff]
      %v429 = vld [vmem:[%s427 + $0x8] sm:$0xff]
      %v430 = vld [vmem:[%s427 + $0x10] sm:$0xff]
      %v431 = vld [vmem:[%s427 + $0x18] sm:$0xff]
      %v432 = vld [vmem:[%s427 + $0x20] sm:$0xff]
      %v433 = vld [vmem:[%s427 + $0x28] sm:$0xff]
      %v434 = vld [vmem:[%s427 + $0x30] sm:$0xff]
      %v435 = vld [vmem:[%s427 + $0x38] sm:$0xff]
      %v436 = vld [vmem:[%s427 + $0x40] sm:$0xff]
      %vm437 = vcmask 1045504
      %v438 = vrot.slane %v237, 2
      %v439 = vrot.slane %v238, 2
      %v440 = vsel %vm437, %v438, %v439
      %v441 = vrot.slane %v239, 2
      %v442 = vsel %vm437, %v439, %v441
      %v443 = vsel %vm268, %v440, 0
      %v445 = vsel %vm268, %v442, 0
      %447 = vmatprep.subr.mxu0 0.0
      %448 = vmatpush1.msra.mxu0 %v428
      %449 = vmatprep.subr.mxu0 0.0
      %450 = vmatpush1.msra.mxu0 %v429
      %451 = vmatprep.subr.mxu0 0.0
      %452 = vmatpush1.msra.mxu0 %v430
      %453 = vmatprep.subr.mxu0 0.0
      %454 = vmatpush1.msra.mxu0 %v431
      %455 = vmatprep.subr.mxu0 0.0
      %456 = vmatpush1.msra.mxu0 %v432
      %457 = vmatprep.subr.mxu0 0.0
      %458 = vmatpush1.msra.mxu0 %v433
      %459 = vmatprep.subr.mxu0 0.0
      %460 = vmatpush1.msra.mxu0 %v434
      %461 = vmatprep.subr.mxu0 0.0
      %462 = vmatpush1.msra.mxu0 %v435
      %463 = vmatprep.subr.mxu0 0.0
      %464 = vmatpush1.msra.mxu0 %v436
      %465 = vmatprep.subr.mxu0 0.0
      %466 = vmatpush1.msra.mxu0 0.0
      %467 = vmatprep.subr.mxu0 0.0
      %468 = vmatpush1.msra.mxu0 0.0
      %469 = vmatprep.subr.mxu0 0.0
      %470 = vmatpush1.msra.mxu0 0.0
      %471 = vmatprep.subr.mxu0 0.0
      %472 = vmatpush1.msra.mxu0 0.0
      %473 = vmatprep.subr.mxu0 0.0
      %474 = vmatpush1.msra.mxu0 0.0
      %475 = vmatprep.subr.mxu0 0.0
      %476 = vmatpush1.msra.mxu0 0.0
      %477 = vmatprep.subr.mxu0 0.0
      %478 = vmatpush1.msra.mxu0 0.0
      %479 = vmatprep.subr.mxu0 0.0
      %480 = vmatpush1.msra.mxu0 0.0
      %481 = vmatprep.subr.mxu0 0.0
      %482 = vmatpush1.msra.mxu0 0.0
      %483 = vmatprep.subr.mxu0 0.0
      %484 = vmatpush1.msra.mxu0 0.0
      %485 = vmatprep.subr.mxu0 0.0
      %486 = vmatpush1.msra.mxu0 0.0
      %487 = vmatprep.subr.mxu0 0.0
      %488 = vmatpush1.msra.mxu0 0.0
      %489 = vmatprep.subr.mxu0 0.0
      %490 = vmatpush1.msra.mxu0 0.0
      %491 = vmatprep.subr.mxu0 0.0
      %492 = vmatpush1.msra.mxu0 0.0
      %493 = vmatprep.subr.mxu0 0.0
      %494 = vmatpush1.msra.mxu0 0.0
      %495 = vmatprep.subr.mxu0 0.0
      %496 = vmatpush1.msra.mxu0 0.0
      %497 = vmatprep.subr.mxu0 0.0
      %498 = vmatpush1.msra.mxu0 0.0
      %499 = vmatprep.subr.mxu0 0.0
      %500 = vmatpush1.msra.mxu0 0.0
      %501 = vmatprep.subr.mxu0 0.0
      %502 = vmatpush1.msra.mxu0 0.0
      %503 = vmatprep.subr.mxu0 0.0
      %504 = vmatpush1.msra.mxu0 0.0
      %505 = vmatprep.subr.mxu0 0.0
      %506 = vmatpush1.msra.mxu0 0.0
      %507 = vmatprep.subr.mxu0 0.0
      %508 = vmatpush1.msra.mxu0 0.0
      %509 = vmatprep.subr.mxu0 0.0
      %510 = vmatpush1.msra.mxu0 0.0
      %511 = vmatprep.mubr.f32.mxu0 0.0
      %512 = vmatmul.mubr.f32.gmra.mrb[0].mxu0 %v443
      %v513 = vpop.f32.mrb[0].mxu0
      %v514 = vadd.f32 0.0, %v513
      %v515 = vpop.f32.mrb[0].mxu0
      %516 = vmatprep.mubr.f32.mxu0 0.0
      %517 = vmatmul.mubr.f32.gmra.mrb[0].mxu0 %v445
      %v518 = vpop.f32.mrb[0].mxu0
      %v519 = vadd.f32 0.0, %v518
      %v520 = vpop.f32.mrb[0].mxu0
      %521 = vdwg.mxu0
      %v522 = vadd.f32 %v419, %v514
      %v523 = vadd.f32 %v424, %v519
      %v524 = vld [vmem:[%s4] sm:$0x1]
      %v526 = vlaneseq
      %v527 = vshrl.u32 %v526, 7
      %v528 = vsub.s32 0, %v527
      %v529 = vrot.slane %v524, %v528
      %v531 = vadd.f32 %v522, %v529
      %v532 = vadd.f32 %v523, %v529
      %v533 = vmax.f32 %v531, 0.0
      %v534 = vmax.f32 %v532, 0.0
      %v535 = vmin.f32 %v533, 6.0
      %v536 = vmin.f32 %v534, 6.0
      %537 = vst [vmem:[%s224] sm:$0xff] %v535
      %538 = vst [vmem:[%s224 + $0x8] sm:$0xff] %v536
      %p539 = scmp.lt.s32.totalorder %s16, 1
      %s540 = scalar_select %p539, %s16, 1
      %s541 = smul.addr %s540, 2
      %s542 = smul.addr %s541, 8
      %s543 = scalar_lea.vmem %s5, %s542
      // Predicated region
      $region41: #{resnet_block_2d_forward.5} parent=39 // pred_check
        %p544 = pneg %p144
      $region42: #{resnet_block_2d_forward.5} parent=39 // pred_check_branch
        %546 = sbr.rel (%p544) target = $region44
      $region43: #{resnet_block_2d_forward.5} parent=39 // pred_region
        _
      $region44: #{resnet_block_2d_forward.5} parent=39 // pred_fallthru
        _
    $region40: #{resnet_block_2d_forward.5} parent=5 // pred_fallthru
      _
    %p547 = scmp.le.s32.totalorder 2, %s11
    // Predicated region
    $region45: #{resnet_block_2d_forward.5} parent=5 // pred_check
      %p548 = pneg %p547
    $region46: #{resnet_block_2d_forward.5} parent=5 // pred_check_branch
      %550 = sbr.rel (%p548) target = $region48
    $region47: #{resnet_block_2d_forward.5} parent=5 // pred_region
      %s551 = ssub.s32 %s11, 2
      // Predicated region
      $region49: #{resnet_block_2d_forward.5} parent=47 // pred_check
        %p552 = pneg %p150
      $region50: #{resnet_block_2d_forward.5} parent=47 // pred_check_branch
        %554 = sbr.rel (%p552) target = $region52
      $region51: #{resnet_block_2d_forward.5} parent=47 // pred_region
        %p555 = scmp.lt.s32.totalorder %s17, 1
        %s556 = scalar_select %p555, %s17, 1
        %s557 = smul.addr %s556, 2
        %s558 = smul.addr %s557, 8
        %s559 = scalar_lea.vmem %s5, %s558
      $region52: #{resnet_block_2d_forward.5} parent=47 // pred_fallthru
        _
    $region48: #{resnet_block_2d_forward.5} parent=5 // pred_fallthru
      _
  $region6: #{resnet_block_2d_forward.5} parent=0 // loop_footer
    %s15 = sadd.s32 1, %s11
  $region7: #{resnet_block_2d_forward.5} parent=0 // loop_footer_branch
    %10 = sbr.rel target = $region3
  $region8: #{resnet_block_2d_forward.5} parent=0 // loop_exit
    _

// kernel: resnet_block_2d_forward.6
$region0: #{resnet_block_2d_forward.6}
  #allocation0 [shape = 'u32[]', space=smem, size = 0x4, offset = 0x4, fixed_abs, tag = 'smem constant byte address 0x4 - core index']
  #allocation1 [shape = 'u32[144,128]{1,0:T(1,128)}', space=vmem, size = 0x12000, scoped, tag = 'internal scratch']
  %s0 = inlined_call_operand.vmem [shape: f32[32,128], index: 0, kind: input, shape index: {}]
  %s1 = inlined_call_operand.vmem [shape: f32[1,128], index: 1, kind: output, shape index: {0}]
  %s2 = inlined_call_operand.vmem [shape: f32[1,128], index: 2, kind: output, shape index: {1}]
  %3 = xla_tuple %s1, %s2
  %s4 = sld [smem:[#allocation0]]
  $region49: #{resnet_block_2d_forward.6} parent=0
    _
  %s6 = ssub.s32 1, %s4
  %s7 = scalar_select 0, %s6, %s4
  loop: start=0, step=1, limit=4
  $region2: #{resnet_block_2d_forward.6} parent=0 // loop_pre_header
    _
  $region3: #{resnet_block_2d_forward.6} parent=0 // loop_header
    %s9 = sphi 0, %s13
    %p10 = scmp.ge.s32.totalorder %s9, 4
    %s19 = sphi 0, %s21
    %s22 = sphi 0, %s19
    %s23 = sphi 0, %s22
    %s39 = sphi 0, %s23
    %s43 = sphi 0, %s43
    %s45 = sphi 0, %s43
    %s46 = sphi 0, %s45
    %s60 = sphi 0, %s46
    %s64 = sphi 0, %s64
    %s66 = sphi 0, %s64
    %s67 = sphi 0, %s66
    %s81 = sphi 0, %s67
  $region4: #{resnet_block_2d_forward.6} parent=0 // loop_header_branch
    %12 = sbr.rel (%p10) target = $region8
  $region5: #{resnet_block_2d_forward.6} parent=0 // loop_body
    %s14 = ssub.s32 %s9, 1
    %s15 = ssub.s32 %s9, 2
    %s16 = sadd.s32 %s9, 1
    %s17 = ssub.s32 %s9, %s16
    %p18 = scmp.eq.s32.totalorder %s17, 0
    %s20 = sadd.s32 %s19, 1
    %s21 = scalar_select %p18, %s19, %s20
    %p24 = pneg %p18
    %p25 = scmp.eq.s32.totalorder %s9, 1
    %p26 = por %p24, %p25
    %p27 = scmp.ne.s32.totalorder %s19, %s22
    %p28 = scmp.eq.s32.totalorder %s9, 0
    %p29 = por %p27, %p28
    %p30 = scmp.ne.s32.totalorder %s19, %s22
    %p31 = scmp.eq.s32.totalorder %s14, 1
    %p32 = por %p30, %p31
    %p33 = scmp.ne.s32.totalorder %s22, %s23
    %p34 = scmp.eq.s32.totalorder %s14, 0
    %p35 = por %p33, %p34
    %p36 = scmp.ne.s32.totalorder %s22, %s23
    %p37 = scmp.eq.s32.totalorder %s15, 1
    %p38 = por %p36, %p37
    %p40 = scmp.ne.s32.totalorder %s23, %s39
    %p41 = scmp.eq.s32.totalorder %s15, 0
    %p42 = por %p40, %p41
    %s44 = sadd.s32 %s43, 1
    %p47 = scmp.eq.s32.totalorder %s9, 1
    %p48 = scmp.ne.s32.totalorder %s43, %s45
    %p49 = scmp.eq.s32.totalorder %s9, 0
    %p50 = por %p48, %p49
    %p51 = scmp.ne.s32.totalorder %s43, %s45
    %p52 = scmp.eq.s32.totalorder %s14, 1
    %p53 = por %p51, %p52
    %p54 = scmp.ne.s32.totalorder %s45, %s46
    %p55 = scmp.eq.s32.totalorder %s14, 0
    %p56 = por %p54, %p55
    %p57 = scmp.ne.s32.totalorder %s45, %s46
    %p58 = scmp.eq.s32.totalorder %s15, 1
    %p59 = por %p57, %p58
    %p61 = scmp.ne.s32.totalorder %s46, %s60
    %p62 = scmp.eq.s32.totalorder %s15, 0
    %p63 = por %p61, %p62
    %s65 = sadd.s32 %s64, 1
    %p68 = scmp.eq.s32.totalorder %s9, 1
    %p69 = scmp.ne.s32.totalorder %s64, %s66
    %p70 = scmp.eq.s32.totalorder %s9, 0
    %p71 = por %p69, %p70
    %p72 = scmp.ne.s32.totalorder %s64, %s66
    %p73 = scmp.eq.s32.totalorder %s14, 1
    %p74 = por %p72, %p73
    %p75 = scmp.ne.s32.totalorder %s66, %s67
    %p76 = scmp.eq.s32.totalorder %s14, 0
    %p77 = por %p75, %p76
    %p78 = scmp.ne.s32.totalorder %s66, %s67
    %p79 = scmp.eq.s32.totalorder %s15, 1
    %p80 = por %p78, %p79
    %p82 = scmp.ne.s32.totalorder %s67, %s81
    %p83 = scmp.eq.s32.totalorder %s15, 0
    %p84 = por %p82, %p83
    %p85 = scmp.le.s32.totalorder 1, %s9
    %p86 = scmp.lt.s32.totalorder %s9, 3
    %p87 = pnand %p85, %p86
    %p88 = pneg %p87
    // Predicated region
    $region9: #{resnet_block_2d_forward.6} parent=5 // pred_check
      _
    $region10: #{resnet_block_2d_forward.6} parent=5 // pred_check_branch
      %90 = sbr.rel (%p87) target = $region12
    $region11: #{resnet_block_2d_forward.6} parent=5 // pred_region
      %s91 = ssub.s32 %s9, 1
    $region12: #{resnet_block_2d_forward.6} parent=5 // pred_fallthru
      _
    %p92 = scmp.lt.s32.totalorder %s9, 2
    // Predicated region
    $region13: #{resnet_block_2d_forward.6} parent=5 // pred_check
      %p93 = pneg %p92
    $region14: #{resnet_block_2d_forward.6} parent=5 // pred_check_branch
      %95 = sbr.rel (%p93) target = $region16
    $region15: #{resnet_block_2d_forward.6} parent=5 // pred_region
      // Predicated region
      $region17: #{resnet_block_2d_forward.6} parent=15 // pred_check
        %p96 = pneg %p29
      $region18: #{resnet_block_2d_forward.6} parent=15 // pred_check_branch
        %98 = sbr.rel (%p96) target = $region20
      $region19: #{resnet_block_2d_forward.6} parent=15 // pred_region
        %s99 = smul.u32 2, %s9
        %p100 = scmp.lt.s32.totalorder %s99, 3
        %s101 = scalar_select %p100, %s99, 3
        %s102 = smul.addr %s101, 8
        %s103 = scalar_lea.vmem %s0, %s102
        %s104 = smul.u32 2, %s9
      $region20: #{resnet_block_2d_forward.6} parent=15 // pred_fallthru
        _
    $region16: #{resnet_block_2d_forward.6} parent=5 // pred_fallthru
      _
    %p105 = scmp.le.s32.totalorder 1, %s9
    %p106 = scmp.lt.s32.totalorder %s9, 3
    %p107 = pnand %p105, %p106
    %p108 = pneg %p107
    // Predicated region
    $region21: #{resnet_block_2d_forward.6} parent=5 // pred_check
      _
    $region22: #{resnet_block_2d_forward.6} parent=5 // pred_check_branch
      %110 = sbr.rel (%p107) target = $region24
    $region23: #{resnet_block_2d_forward.6} parent=5 // pred_region
      %s111 = ssub.s32 %s9, 1
      %s112 = smul.u32 2, %s14
      %p113 = scmp.lt.s32.totalorder %s112, 3
      %s114 = scalar_select %p113, %s112, 3
      %s115 = smul.addr %s114, 8
      %s116 = scalar_lea.vmem %s0, %s115
      %p117 = pneg %p35
      %p118 = pneg %p32
      %p119 = pneg %p56
      %p120 = pneg %p53
      %p121 = pneg %p77
      %p122 = pneg %p74
      %s123 = smul.u32 2, %s14
      %p124 = scmp.lt.s32.totalorder %s123, 3
      %s125 = scalar_select %p124, %s123, 3
      %s126 = smul.addr %s125, 8
      %s127 = scalar_lea.vmem %s0, %s126
      %s128 = smul.u32 2, %s14
      %p129 = scmp.eq.s32.totalorder %s14, 0
      // Predicated region
      $region25: #{resnet_block_2d_forward.6} parent=23 // pred_check
        %p130 = pneg %p129
      $region26: #{resnet_block_2d_forward.6} parent=23 // pred_check_branch
        %132 = sbr.rel (%p130) target = $region28
      $region27: #{resnet_block_2d_forward.6} parent=23 // pred_region
        %133 = vst [vmem:[%s1] sm:$0x1] 0.0
        %134 = vst [vmem:[%s2] sm:$0x1] 0.0
      $region28: #{resnet_block_2d_forward.6} parent=23 // pred_fallthru
        _
      %v135 = vld [vmem:[%s127] sm:$0xff]
      %v136 = vld [vmem:[%s127 + $0x8] sm:$0xff]
      %v137 = vld [vmem:[%s1] sm:$0x1]
      %v138 = vadd.f32 %v135, %v136
      %v139 = vrot.slane %v138, 4
      %v140 = vadd.f32 %v138, %v139
      %v141 = vrot.slane %v140, 2
      %v142 = vadd.f32 %v140, %v141
      %v143 = vrot.slane %v142, 1
      %v144 = vadd.f32 %v142, %v143
      %v145 = vadd.f32 %v137, %v144
      %146 = vst [vmem:[%s1] sm:$0x1] %v145
      %v147 = vld [vmem:[%s2] sm:$0x1]
      %v148 = vmul.f32 %v135, %v135
      %v149 = vmul.f32 %v136, %v136
      %v150 = vadd.f32 %v148, %v149
      %v151 = vrot.slane %v150, 4
      %v152 = vadd.f32 %v150, %v151
      %v153 = vrot.slane %v152, 2
      %v154 = vadd.f32 %v152, %v153
      %v155 = vrot.slane %v154, 1
      %v156 = vadd.f32 %v154, %v155
      %v157 = vadd.f32 %v147, %v156
      %158 = vst [vmem:[%s2] sm:$0x1] %v157
      // Predicated region
      $region29: #{resnet_block_2d_forward.6} parent=23 // pred_check
        %p159 = pneg %p53
      $region30: #{resnet_block_2d_forward.6} parent=23 // pred_check_branch
        %161 = sbr.rel (%p159) target = $region32
      $region31: #{resnet_block_2d_forward.6} parent=23 // pred_region
        _
      $region32: #{resnet_block_2d_forward.6} parent=23 // pred_fallthru
        _
      // Predicated region
      $region33: #{resnet_block_2d_forward.6} parent=23 // pred_check
        %p162 = pneg %p74
      $region34: #{resnet_block_2d_forward.6} parent=23 // pred_check_branch
        %164 = sbr.rel (%p162) target = $region36
      $region35: #{resnet_block_2d_forward.6} parent=23 // pred_region
        _
      $region36: #{resnet_block_2d_forward.6} parent=23 // pred_fallthru
        _
      // Predicated region
      $region37: #{resnet_block_2d_forward.6} parent=23 // pred_check
        %p165 = pneg %p53
      $region38: #{resnet_block_2d_forward.6} parent=23 // pred_check_branch
        %167 = sbr.rel (%p165) target = $region40
      $region39: #{resnet_block_2d_forward.6} parent=23 // pred_region
        _
      $region40: #{resnet_block_2d_forward.6} parent=23 // pred_fallthru
        _
      // Predicated region
      $region41: #{resnet_block_2d_forward.6} parent=23 // pred_check
        %p168 = pneg %p74
      $region42: #{resnet_block_2d_forward.6} parent=23 // pred_check_branch
        %170 = sbr.rel (%p168) target = $region44
      $region43: #{resnet_block_2d_forward.6} parent=23 // pred_region
        _
      $region44: #{resnet_block_2d_forward.6} parent=23 // pred_fallthru
        _
    $region24: #{resnet_block_2d_forward.6} parent=5 // pred_fallthru
      _
    %p171 = scmp.le.s32.totalorder 2, %s9
    // Predicated region
    $region45: #{resnet_block_2d_forward.6} parent=5 // pred_check
      %p172 = pneg %p171
    $region46: #{resnet_block_2d_forward.6} parent=5 // pred_check_branch
      %174 = sbr.rel (%p172) target = $region48
    $region47: #{resnet_block_2d_forward.6} parent=5 // pred_region
      %s175 = ssub.s32 %s9, 2
    $region48: #{resnet_block_2d_forward.6} parent=5 // pred_fallthru
      _
  $region6: #{resnet_block_2d_forward.6} parent=0 // loop_footer
    %s13 = sadd.s32 1, %s9
  $region7: #{resnet_block_2d_forward.6} parent=0 // loop_footer_branch
    %8 = sbr.rel target = $region3
  $region8: #{resnet_block_2d_forward.6} parent=0 // loop_exit
    _

// kernel: tile.53
$region0: #{tile.53}
  #allocation0 [shape = 's32[1]{0}', space=sflag, size = 0x4, scoped, tag = 'scoped memory for tile.53']
  %s0 = inlined_call_operand.vmem [shape: f32[8], index: 0, kind: input, shape index: {}]
  %s1 = inlined_call_operand.vmem [shape: f32[18,8], index: 1, kind: output, shape index: {}]
  // Predicated region
  $region2: #{tile.53} parent=0 // pred_check
    _
  $region3: #{tile.53} parent=0 // pred_check_branch
    %3 = sbr.rel (0) target = $region5
  $region4: #{tile.53} parent=0 // pred_region
    _
  $region5: #{tile.53} parent=0 // pred_fallthru
    _
  %v4 = vld [vmem:[%s0] ss:$0 sm:$0xff]
  %5 = vst [vmem:[%s1] sm:$0xff] %v4
  %s6 = scalar_lea.vmem %s1, 8
  %7 = vst [vmem:[%s6] sm:$0xff] %v4
  %s8 = scalar_lea.vmem %s1, 16
  %9 = vst [vmem:[%s8] sm:$0xff] %v4

// kernel: resnet_block_2d_forward.7
$region0: #{resnet_block_2d_forward.7}
  #allocation0 [shape = 'u32[]', space=smem, size = 0x4, offset = 0x4, fixed_abs, tag = 'smem constant byte address 0x4 - core index']
  #allocation1 [shape = 'u32[144,128]{1,0:T(1,128)}', space=vmem, size = 0x12000, scoped, tag = 'internal scratch']
  %s0 = inlined_call_operand.vmem [shape: f32[2,18,144], index: 0, kind: input, shape index: {}]
  %s1 = inlined_call_operand.vmem [shape: f32[18,144], index: 1, kind: input, shape index: {}]
  %s2 = inlined_call_operand.vmem [shape: f32[18,144], index: 2, kind: input, shape index: {}]
  %s3 = inlined_call_operand.vmem [shape: f32[3,144,128], index: 3, kind: input, shape index: {}]
  %s4 = inlined_call_operand.vmem [shape: f32[1,128], index: 4, kind: input, shape index: {}]
  %s5 = inlined_call_operand.vmem [shape: f32[2,16,64], index: 5, kind: input, shape index: {}]
  %s6 = inlined_call_operand.vmem [shape: f32[1,64,128], index: 6, kind: input, shape index: {}]
  %s7 = inlined_call_operand.vmem [shape: f32[1,128], index: 7, kind: input, shape index: {}]
  %s8 = inlined_call_operand.vmem [shape: f32[2,16,128], index: 8, kind: output, shape index: {}]
  %s9 = sld [smem:[#allocation0]]
  $region65: #{resnet_block_2d_forward.7} parent=0
    _
  %s11 = ssub.s32 1, %s9
  %s12 = scalar_select 0, %s11, %s9
  loop: start=0, step=1, limit=4
  $region2: #{resnet_block_2d_forward.7} parent=0 // loop_pre_header
    _
  $region3: #{resnet_block_2d_forward.7} parent=0 // loop_header
    %s14 = sphi 0, %s18
    %p15 = scmp.ge.s32.totalorder %s14, 4
    %s24 = sphi 0, %s26
    %s27 = sphi 0, %s24
    %s28 = sphi 0, %s27
    %s44 = sphi 0, %s28
    %s48 = sphi 0, %s48
    %s50 = sphi 0, %s48
    %s51 = sphi 0, %s50
    %s65 = sphi 0, %s51
    %s69 = sphi 0, %s69
    %s71 = sphi 0, %s69
    %s72 = sphi 0, %s71
    %s86 = sphi 0, %s72
    %s90 = sphi 0, %s90
    %s92 = sphi 0, %s90
    %s93 = sphi 0, %s92
    %s107 = sphi 0, %s93
    %s111 = sphi 0, %s111
    %s113 = sphi 0, %s111
    %s114 = sphi 0, %s113
    %s128 = sphi 0, %s114
    %s134 = sphi 0, %s136
    %s137 = sphi 0, %s134
    %s138 = sphi 0, %s137
    %s154 = sphi 0, %s138
    %s158 = sphi 0, %s158
    %s160 = sphi 0, %s158
    %s161 = sphi 0, %s160
    %s175 = sphi 0, %s161
    %s179 = sphi 0, %s179
    %s181 = sphi 0, %s179
    %s182 = sphi 0, %s181
    %s196 = sphi 0, %s182
    %s202 = sphi 0, %s204
    %s205 = sphi 0, %s202
    %s206 = sphi 0, %s205
    %s222 = sphi 0, %s206
  $region4: #{resnet_block_2d_forward.7} parent=0 // loop_header_branch
    %17 = sbr.rel (%p15) target = $region8
  $region5: #{resnet_block_2d_forward.7} parent=0 // loop_body
    %s19 = ssub.s32 %s14, 1
    %s20 = ssub.s32 %s14, 2
    %s21 = sadd.s32 %s14, 1
    %s22 = ssub.s32 %s14, %s21
    %p23 = scmp.eq.s32.totalorder %s22, 0
    %s25 = sadd.s32 %s24, 1
    %s26 = scalar_select %p23, %s24, %s25
    %p29 = pneg %p23
    %p30 = scmp.eq.s32.totalorder %s14, 1
    %p31 = por %p29, %p30
    %p32 = scmp.ne.s32.totalorder %s24, %s27
    %p33 = scmp.eq.s32.totalorder %s14, 0
    %p34 = por %p32, %p33
    %p35 = scmp.ne.s32.totalorder %s24, %s27
    %p36 = scmp.eq.s32.totalorder %s19, 1
    %p37 = por %p35, %p36
    %p38 = scmp.ne.s32.totalorder %s27, %s28
    %p39 = scmp.eq.s32.totalorder %s19, 0
    %p40 = por %p38, %p39
    %p41 = scmp.ne.s32.totalorder %s27, %s28
    %p42 = scmp.eq.s32.totalorder %s20, 1
    %p43 = por %p41, %p42
    %p45 = scmp.ne.s32.totalorder %s28, %s44
    %p46 = scmp.eq.s32.totalorder %s20, 0
    %p47 = por %p45, %p46
    %s49 = sadd.s32 %s48, 1
    %p52 = scmp.eq.s32.totalorder %s14, 1
    %p53 = scmp.ne.s32.totalorder %s48, %s50
    %p54 = scmp.eq.s32.totalorder %s14, 0
    %p55 = por %p53, %p54
    %p56 = scmp.ne.s32.totalorder %s48, %s50
    %p57 = scmp.eq.s32.totalorder %s19, 1
    %p58 = por %p56, %p57
    %p59 = scmp.ne.s32.totalorder %s50, %s51
    %p60 = scmp.eq.s32.totalorder %s19, 0
    %p61 = por %p59, %p60
    %p62 = scmp.ne.s32.totalorder %s50, %s51
    %p63 = scmp.eq.s32.totalorder %s20, 1
    %p64 = por %p62, %p63
    %p66 = scmp.ne.s32.totalorder %s51, %s65
    %p67 = scmp.eq.s32.totalorder %s20, 0
    %p68 = por %p66, %p67
    %s70 = sadd.s32 %s69, 1
    %p73 = scmp.eq.s32.totalorder %s14, 1
    %p74 = scmp.ne.s32.totalorder %s69, %s71
    %p75 = scmp.eq.s32.totalorder %s14, 0
    %p76 = por %p74, %p75
    %p77 = scmp.ne.s32.totalorder %s69, %s71
    %p78 = scmp.eq.s32.totalorder %s19, 1
    %p79 = por %p77, %p78
    %p80 = scmp.ne.s32.totalorder %s71, %s72
    %p81 = scmp.eq.s32.totalorder %s19, 0
    %p82 = por %p80, %p81
    %p83 = scmp.ne.s32.totalorder %s71, %s72
    %p84 = scmp.eq.s32.totalorder %s20, 1
    %p85 = por %p83, %p84
    %p87 = scmp.ne.s32.totalorder %s72, %s86
    %p88 = scmp.eq.s32.totalorder %s20, 0
    %p89 = por %p87, %p88
    %s91 = sadd.s32 %s90, 1
    %p94 = scmp.eq.s32.totalorder %s14, 1
    %p95 = scmp.ne.s32.totalorder %s90, %s92
    %p96 = scmp.eq.s32.totalorder %s14, 0
    %p97 = por %p95, %p96
    %p98 = scmp.ne.s32.totalorder %s90, %s92
    %p99 = scmp.eq.s32.totalorder %s19, 1
    %p100 = por %p98, %p99
    %p101 = scmp.ne.s32.totalorder %s92, %s93
    %p102 = scmp.eq.s32.totalorder %s19, 0
    %p103 = por %p101, %p102
    %p104 = scmp.ne.s32.totalorder %s92, %s93
    %p105 = scmp.eq.s32.totalorder %s20, 1
    %p106 = por %p104, %p105
    %p108 = scmp.ne.s32.totalorder %s93, %s107
    %p109 = scmp.eq.s32.totalorder %s20, 0
    %p110 = por %p108, %p109
    %s112 = sadd.s32 %s111, 1
    %p115 = scmp.eq.s32.totalorder %s14, 1
    %p116 = scmp.ne.s32.totalorder %s111, %s113
    %p117 = scmp.eq.s32.totalorder %s14, 0
    %p118 = por %p116, %p117
    %p119 = scmp.ne.s32.totalorder %s111, %s113
    %p120 = scmp.eq.s32.totalorder %s19, 1
    %p121 = por %p119, %p120
    %p122 = scmp.ne.s32.totalorder %s113, %s114
    %p123 = scmp.eq.s32.totalorder %s19, 0
    %p124 = por %p122, %p123
    %p125 = scmp.ne.s32.totalorder %s113, %s114
    %p126 = scmp.eq.s32.totalorder %s20, 1
    %p127 = por %p125, %p126
    %p129 = scmp.ne.s32.totalorder %s114, %s128
    %p130 = scmp.eq.s32.totalorder %s20, 0
    %p131 = por %p129, %p130
    %s132 = ssub.s32 %s14, %s21
    %p133 = scmp.eq.s32.totalorder %s132, 0
    %s135 = sadd.s32 %s134, 1
    %s136 = scalar_select %p133, %s134, %s135
    %p139 = pneg %p133
    %p140 = scmp.eq.s32.totalorder %s14, 1
    %p141 = por %p139, %p140
    %p142 = scmp.ne.s32.totalorder %s134, %s137
    %p143 = scmp.eq.s32.totalorder %s14, 0
    %p144 = por %p142, %p143
    %p145 = scmp.ne.s32.totalorder %s134, %s137
    %p146 = scmp.eq.s32.totalorder %s19, 1
    %p147 = por %p145, %p146
    %p148 = scmp.ne.s32.totalorder %s137, %s138
    %p149 = scmp.eq.s32.totalorder %s19, 0
    %p150 = por %p148, %p149
    %p151 = scmp.ne.s32.totalorder %s137, %s138
    %p152 = scmp.eq.s32.totalorder %s20, 1
    %p153 = por %p151, %p152
    %p155 = scmp.ne.s32.totalorder %s138, %s154
    %p156 = scmp.eq.s32.totalorder %s20, 0
    %p157 = por %p155, %p156
    %s159 = sadd.s32 %s158, 1
    %p162 = scmp.eq.s32.totalorder %s14, 1
    %p163 = scmp.ne.s32.totalorder %s158, %s160
    %p164 = scmp.eq.s32.totalorder %s14, 0
    %p165 = por %p163, %p164
    %p166 = scmp.ne.s32.totalorder %s158, %s160
    %p167 = scmp.eq.s32.totalorder %s19, 1
    %p168 = por %p166, %p167
    %p169 = scmp.ne.s32.totalorder %s160, %s161
    %p170 = scmp.eq.s32.totalorder %s19, 0
    %p171 = por %p169, %p170
    %p172 = scmp.ne.s32.totalorder %s160, %s161
    %p173 = scmp.eq.s32.totalorder %s20, 1
    %p174 = por %p172, %p173
    %p176 = scmp.ne.s32.totalorder %s161, %s175
    %p177 = scmp.eq.s32.totalorder %s20, 0
    %p178 = por %p176, %p177
    %s180 = sadd.s32 %s179, 1
    %p183 = scmp.eq.s32.totalorder %s14, 1
    %p184 = scmp.ne.s32.totalorder %s179, %s181
    %p185 = scmp.eq.s32.totalorder %s14, 0
    %p186 = por %p184, %p185
    %p187 = scmp.ne.s32.totalorder %s179, %s181
    %p188 = scmp.eq.s32.totalorder %s19, 1
    %p189 = por %p187, %p188
    %p190 = scmp.ne.s32.totalorder %s181, %s182
    %p191 = scmp.eq.s32.totalorder %s19, 0
    %p192 = por %p190, %p191
    %p193 = scmp.ne.s32.totalorder %s181, %s182
    %p194 = scmp.eq.s32.totalorder %s20, 1
    %p195 = por %p193, %p194
    %p197 = scmp.ne.s32.totalorder %s182, %s196
    %p198 = scmp.eq.s32.totalorder %s20, 0
    %p199 = por %p197, %p198
    %s200 = ssub.s32 %s14, %s21
    %p201 = scmp.eq.s32.totalorder %s200, 0
    %s203 = sadd.s32 %s202, 1
    %s204 = scalar_select %p201, %s202, %s203
    %p207 = pneg %p201
    %p208 = scmp.eq.s32.totalorder %s14, 1
    %p209 = por %p207, %p208
    %p210 = scmp.ne.s32.totalorder %s202, %s205
    %p211 = scmp.eq.s32.totalorder %s14, 0
    %p212 = por %p210, %p211
    %p213 = scmp.ne.s32.totalorder %s202, %s205
    %p214 = scmp.eq.s32.totalorder %s19, 1
    %p215 = por %p213, %p214
    %p216 = scmp.ne.s32.totalorder %s205, %s206
    %p217 = scmp.eq.s32.totalorder %s19, 0
    %p218 = por %p216, %p217
    %p219 = scmp.ne.s32.totalorder %s205, %s206
    %p220 = scmp.eq.s32.totalorder %s20, 1
    %p221 = por %p219, %p220
    %p223 = scmp.ne.s32.totalorder %s206, %s222
    %p224 = scmp.eq.s32.totalorder %s20, 0
    %p225 = por %p223, %p224
    %p226 = scmp.le.s32.totalorder 1, %s14
    %p227 = scmp.lt.s32.totalorder %s14, 3
    %p228 = pnand %p226, %p227
    %p229 = pneg %p228
    // Predicated region
    $region9: #{resnet_block_2d_forward.7} parent=5 // pred_check
      _
    $region10: #{resnet_block_2d_forward.7} parent=5 // pred_check_branch
      %231 = sbr.rel (%p228) target = $region12
    $region11: #{resnet_block_2d_forward.7} parent=5 // pred_region
      %s232 = ssub.s32 %s14, 1
      // Predicated region
      $region13: #{resnet_block_2d_forward.7} parent=11 // pred_check
        %p233 = pneg %p61
      $region14: #{resnet_block_2d_forward.7} parent=11 // pred_check_branch
        %235 = sbr.rel (%p233) target = $region16
      $region15: #{resnet_block_2d_forward.7} parent=11 // pred_region
        _
      $region16: #{resnet_block_2d_forward.7} parent=11 // pred_fallthru
        _
      // Predicated region
      $region17: #{resnet_block_2d_forward.7} parent=11 // pred_check
        %p236 = pneg %p82
      $region18: #{resnet_block_2d_forward.7} parent=11 // pred_check_branch
        %238 = sbr.rel (%p236) target = $region20
      $region19: #{resnet_block_2d_forward.7} parent=11 // pred_region
        _
      $region20: #{resnet_block_2d_forward.7} parent=11 // pred_fallthru
        _
      // Predicated region
      $region21: #{resnet_block_2d_forward.7} parent=11 // pred_check
        %p239 = pneg %p103
      $region22: #{resnet_block_2d_forward.7} parent=11 // pred_check_branch
        %241 = sbr.rel (%p239) target = $region24
      $region23: #{resnet_block_2d_forward.7} parent=11 // pred_region
        _
      $region24: #{resnet_block_2d_forward.7} parent=11 // pred_fallthru
        _
      // Predicated region
      $region25: #{resnet_block_2d_forward.7} parent=11 // pred_check
        %p242 = pneg %p124
      $region26: #{resnet_block_2d_forward.7} parent=11 // pred_check_branch
        %244 = sbr.rel (%p242) target = $region28
      $region27: #{resnet_block_2d_forward.7} parent=11 // pred_region
        _
      $region28: #{resnet_block_2d_forward.7} parent=11 // pred_fallthru
        _
      // Predicated region
      $region29: #{resnet_block_2d_forward.7} parent=11 // pred_check
        %p245 = pneg %p171
      $region30: #{resnet_block_2d_forward.7} parent=11 // pred_check_branch
        %247 = sbr.rel (%p245) target = $region32
      $region31: #{resnet_block_2d_forward.7} parent=11 // pred_region
        _
      $region32: #{resnet_block_2d_forward.7} parent=11 // pred_fallthru
        _
      // Predicated region
      $region33: #{resnet_block_2d_forward.7} parent=11 // pred_check
        %p248 = pneg %p192
      $region34: #{resnet_block_2d_forward.7} parent=11 // pred_check_branch
        %250 = sbr.rel (%p248) target = $region36
      $region35: #{resnet_block_2d_forward.7} parent=11 // pred_region
        _
      $region36: #{resnet_block_2d_forward.7} parent=11 // pred_fallthru
        _
    $region12: #{resnet_block_2d_forward.7} parent=5 // pred_fallthru
      _
    %p251 = scmp.lt.s32.totalorder %s14, 2
    // Predicated region
    $region37: #{resnet_block_2d_forward.7} parent=5 // pred_check
      %p252 = pneg %p251
    $region38: #{resnet_block_2d_forward.7} parent=5 // pred_check_branch
      %254 = sbr.rel (%p252) target = $region40
    $region39: #{resnet_block_2d_forward.7} parent=5 // pred_region
      // Predicated region
      $region41: #{resnet_block_2d_forward.7} parent=39 // pred_check
        %p255 = pneg %p34
      $region42: #{resnet_block_2d_forward.7} parent=39 // pred_check_branch
        %257 = sbr.rel (%p255) target = $region44
      $region43: #{resnet_block_2d_forward.7} parent=39 // pred_region
        %p258 = scmp.lt.s32.totalorder %s14, 1
        %s259 = scalar_select %p258, %s14, 1
        %s260 = smul.addr %s259, 6
        %s261 = smul.addr %s260, 8
        %s262 = scalar_lea.vmem %s0, %s261
      $region44: #{resnet_block_2d_forward.7} parent=39 // pred_fallthru
        _
      // Predicated region
      $region45: #{resnet_block_2d_forward.7} parent=39 // pred_check
        %p263 = pneg %p144
      $region46: #{resnet_block_2d_forward.7} parent=39 // pred_check_branch
        %265 = sbr.rel (%p263) target = $region48
      $region47: #{resnet_block_2d_forward.7} parent=39 // pred_region
        %p266 = scmp.lt.s32.totalorder %s14, 1
        %s267 = scalar_select %p266, %s14, 1
        %s268 = smul.addr %s267, 2
        %s269 = smul.addr %s268, 8
        %s270 = scalar_lea.vmem %s5, %s269
      $region48: #{resnet_block_2d_forward.7} parent=39 // pred_fallthru
        _
    $region40: #{resnet_block_2d_forward.7} parent=5 // pred_fallthru
      _
    %p271 = scmp.le.s32.totalorder 1, %s14
    %p272 = scmp.lt.s32.totalorder %s14, 3
    %p273 = pnand %p271, %p272
    %p274 = pneg %p273
    // Predicated region
    $region49: #{resnet_block_2d_forward.7} parent=5 // pred_check
      _
    $region50: #{resnet_block_2d_forward.7} parent=5 // pred_check_branch
      %276 = sbr.rel (%p273) target = $region52
    $region51: #{resnet_block_2d_forward.7} parent=5 // pred_region
      %s277 = ssub.s32 %s14, 1
      %p278 = scmp.lt.s32.totalorder %s19, 1
      %s279 = scalar_select %p278, %s19, 1
      %s280 = smul.addr %s279, 6
      %s281 = smul.addr %s280, 8
      %s282 = scalar_lea.vmem %s0, %s281
      %p283 = pneg %p40
      %p284 = pneg %p37
      %p285 = pneg %p61
      %p286 = pneg %p58
      %p287 = pneg %p82
      %p288 = pneg %p79
      %p289 = pneg %p103
      %p290 = pneg %p100
      %p291 = pneg %p124
      %p292 = pneg %p121
      %p293 = scmp.lt.s32.totalorder %s19, 1
      %s294 = scalar_select %p293, %s19, 1
      %s295 = smul.addr %s294, 2
      %s296 = smul.addr %s295, 8
      %s297 = scalar_lea.vmem %s5, %s296
      %p298 = pneg %p150
      %p299 = pneg %p147
      %p300 = pneg %p171
      %p301 = pneg %p168
      %p302 = pneg %p192
      %p303 = pneg %p189
      %p304 = pneg %p218
      %p305 = pneg %p215
      %p306 = scmp.lt.s32.totalorder %s19, 1
      %s307 = scalar_select %p306, %s19, 1
      %s308 = smul.addr %s307, 2
      %s309 = smul.addr %s308, 8
      %s310 = scalar_lea.vmem %s8, %s309
      %p311 = scmp.lt.s32.totalorder %s19, 1
      %s312 = scalar_select %p311, %s19, 1
      %s313 = smul.addr %s312, 6
      %s314 = smul.addr %s313, 8
      %s315 = scalar_lea.vmem %s0, %s314
      %p316 = scmp.lt.s32.totalorder %s19, 1
      %s317 = scalar_select %p316, %s19, 1
      %s318 = smul.addr %s317, 2
      %s319 = smul.addr %s318, 8
      %s320 = scalar_lea.vmem %s5, %s319
      %p321 = scmp.lt.s32.totalorder %s19, 1
      %s322 = scalar_select %p321, %s19, 1
      %s323 = smul.addr %s322, 2
      %s324 = smul.addr %s323, 8
      %s325 = scalar_lea.vmem %s8, %s324
      %v326 = vld [vmem:[%s315] sm:$0xff]
      %v327 = vld [vmem:[%s315 + $0x8] sm:$0xff]
      %v328 = vld [vmem:[%s315 + $0x10] sm:$0xff]
      %v329 = vld [vmem:[%s315 + $0x18] sm:$0xff]
      %v330 = vld [vmem:[%s315 + $0x20] sm:$0x3]
      %v331 = vld [vmem:[%s315 + $0x28] sm:$0x3]
      %v332 = vld [vmem:[%s1] sm:$0xff]
      %v333 = vld [vmem:[%s1 + $0x8] sm:$0xff]
      %v334 = vld [vmem:[%s1 + $0x10] sm:$0xff]
      %v335 = vld [vmem:[%s1 + $0x18] sm:$0xff]
      %v336 = vld [vmem:[%s1 + $0x20] sm:$0x3]
      %v337 = vld [vmem:[%s1 + $0x28] sm:$0x3]
      %v338 = vmul.f32 %v326, %v332
      %v339 = vmul.f32 %v327, %v333
      %v340 = vmul.f32 %v328, %v334
      %v341 = vmul.f32 %v329, %v335
      %v342 = vmul.f32 %v330, %v336
      %v343 = vmul.f32 %v331, %v337
      %v344 = vld [vmem:[%s2] sm:$0xff]
      %v345 = vld [vmem:[%s2 + $0x8] sm:$0xff]
      %v346 = vld [vmem:[%s2 + $0x10] sm:$0xff]
      %v347 = vld [vmem:[%s2 + $0x18] sm:$0xff]
      %v348 = vld [vmem:[%s2 + $0x20] sm:$0x3]
      %v349 = vld [vmem:[%s2 + $0x28] sm:$0x3]
      %v350 = vadd.f32 %v338, %v344
      %v351 = vadd.f32 %v339, %v345
      %v352 = vadd.f32 %v340, %v346
      %v353 = vadd.f32 %v341, %v347
      %v354 = vadd.f32 %v342, %v348
      %v355 = vadd.f32 %v343, %v349
      %v356 = vld [vmem:[%s3] sm:$0xff]
      %v357 = vld [vmem:[%s3 + $0x8] sm:$0xff]
      %v358 = vld [vmem:[%s3 + $0x10] sm:$0xff]
      %v359 = vld [vmem:[%s3 + $0x18] sm:$0xff]
      %v360 = vld [vmem:[%s3 + $0x20] sm:$0xff]
      %v361 = vld [vmem:[%s3 + $0x28] sm:$0xff]
      %v362 = vld [vmem:[%s3 + $0x30] sm:$0xff]
      %v363 = vld [vmem:[%s3 + $0x38] sm:$0xff]
      %v364 = vld [vmem:[%s3 + $0x40] sm:$0xff]
      %v365 = vld [vmem:[%s3 + $0x48] sm:$0xff]
      %v366 = vld [vmem:[%s3 + $0x50] sm:$0xff]
      %v367 = vld [vmem:[%s3 + $0x58] sm:$0xff]
      %v368 = vld [vmem:[%s3 + $0x60] sm:$0xff]
      %v369 = vld [vmem:[%s3 + $0x68] sm:$0xff]
      %v370 = vld [vmem:[%s3 + $0x70] sm:$0xff]
      %v371 = vld [vmem:[%s3 + $0x78] sm:$0xff]
      %v372 = vld [vmem:[%s3 + $0x80] sm:$0xff]
      %v373 = vld [vmem:[%s3 + $0x88] sm:$0xff]
      %s374 = scalar_lea.vmem %s3, 144
      %v375 = vld [vmem:[%s374] sm:$0xff]
      %v376 = vld [vmem:[%s374 + $0x8] sm:$0xff]
      %v377 = vld [vmem:[%s374 + $0x10] sm:$0xff]
      %v378 = vld [vmem:[%s374 + $0x18] sm:$0xff]
      %v379 = vld [vmem:[%s374 + $0x20] sm:$0xff]
      %v380 = vld [vmem:[%s374 + $0x28] sm:$0xff]
      %v381 = vld [vmem:[%s374 + $0x30] sm:$0xff]
      %v382 = vld [vmem:[%s374 + $0x38] sm:$0xff]
      %v383 = vld [vmem:[%s374 + $0x40] sm:$0xff]
      %v384 = vld [vmem:[%s374 + $0x48] sm:$0xff]
      %v385 = vld [vmem:[%s374 + $0x50] sm:$0xff]
      %v386 = vld [vmem:[%s374 + $0x58] sm:$0xff]
      %v387 = vld [vmem:[%s374 + $0x60] sm:$0xff]
      %v388 = vld [vmem:[%s374 + $0x68] sm:$0xff]
      %v389 = vld [vmem:[%s374 + $0x70] sm:$0xff]
      %v390 = vld [vmem:[%s374 + $0x78] sm:$0xff]
      %v391 = vld [vmem:[%s374 + $0x80] sm:$0xff]
      %v392 = vld [vmem:[%s374 + $0x88] sm:$0xff]
      %vm399 = vcmask 1046528
      %v400 = vrot.slane %v350, 1
      %v401 = vrot.slane %v352, 1
      %v402 = vsel %vm399, %v400, %v401
      %v403 = vrot.slane %v351, 1
      %v404 = vrot.slane %v353, 1
      %v405 = vsel %vm399, %v403, %v404
      %v406 = vrot.slane %v354, 1
      %v407 = vsel %vm399, %v401, %v406
      %v408 = vrot.slane %v355, 1
      %v409 = vsel %vm399, %v404, %v408
      %vm412 = vcmask 130048
      %v413 = vsel %vm412, %v405, 0
      %v415 = vsel %vm412, %v409, 0
      %417 = vmatprep.subr.mxu0 0.0
      %418 = vmatpush1.msra.mxu0 %v375
      %419 = vmatprep.subr.mxu0 0.0
      %420 = vmatpush1.msra.mxu0 %v376
      %421 = vmatprep.subr.mxu0 0.0
      %422 = vmatpush1.msra.mxu0 %v377
      %423 = vmatprep.subr.mxu0 0.0
      %424 = vmatpush1.msra.mxu0 %v378
      %425 = vmatprep.subr.mxu0 0.0
      %426 = vmatpush1.msra.mxu0 %v379
      %427 = vmatprep.subr.mxu0 0.0
      %428 = vmatpush1.msra.mxu0 %v380
      %429 = vmatprep.subr.mxu0 0.0
      %430 = vmatpush1.msra.mxu0 %v381
      %431 = vmatprep.subr.mxu0 0.0
      %432 = vmatpush1.msra.mxu0 %v382
      %433 = vmatprep.subr.mxu0 0.0
      %434 = vmatpush1.msra.mxu0 %v383
      %435 = vmatprep.subr.mxu0 0.0
      %436 = vmatpush1.msra.mxu0 %v384
      %437 = vmatprep.subr.mxu0 0.0
      %438 = vmatpush1.msra.mxu0 %v385
      %439 = vmatprep.subr.mxu0 0.0
      %440 = vmatpush1.msra.mxu0 %v386
      %441 = vmatprep.subr.mxu0 0.0
      %442 = vmatpush1.msra.mxu0 %v387
      %443 = vmatprep.subr.mxu0 0.0
      %444 = vmatpush1.msra.mxu0 %v388
      %445 = vmatprep.subr.mxu0 0.0
      %446 = vmatpush1.msra.mxu0 %v389
      %447 = vmatprep.subr.mxu0 0.0
      %448 = vmatpush1.msra.mxu0 %v390
      %449 = vmatprep.subr.mxu0 0.0
      %450 = vmatpush1.msra.mxu0 %v391
      %451 = vmatprep.subr.mxu0 0.0
      %452 = vmatpush1.msra.mxu0 %v392
      %453 = vmatprep.subr.mxu0 0.0
      %454 = vmatpush1.msra.mxu0 0.0
      %455 = vmatprep.subr.mxu0 0.0
      %456 = vmatpush1.msra.mxu0 0.0
      %457 = vmatprep.subr.mxu0 0.0
      %458 = vmatpush1.msra.mxu0 0.0
      %459 = vmatprep.subr.mxu0 0.0
      %460 = vmatpush1.msra.mxu0 0.0
      %461 = vmatprep.subr.mxu0 0.0
      %462 = vmatpush1.msra.mxu0 0.0
      %463 = vmatprep.subr.mxu0 0.0
      %464 = vmatpush1.msra.mxu0 0.0
      %465 = vmatprep.subr.mxu0 0.0
      %466 = vmatpush1.msra.mxu0 0.0
      %467 = vmatprep.subr.mxu0 0.0
      %468 = vmatpush1.msra.mxu0 0.0
      %469 = vmatprep.subr.mxu0 0.0
      %470 = vmatpush1.msra.mxu0 0.0
      %471 = vmatprep.subr.mxu0 0.0
      %472 = vmatpush1.msra.mxu0 0.0
      %473 = vmatprep.subr.mxu0 0.0
      %474 = vmatpush1.msra.mxu0 0.0
      %475 = vmatprep.subr.mxu0 0.0
      %476 = vmatpush1.msra.mxu0 0.0
      %477 = vmatprep.subr.mxu0 0.0
      %478 = vmatpush1.msra.mxu0 0.0
      %479 = vmatprep.subr.mxu0 0.0
      %480 = vmatpush1.msra.mxu0 0.0
      %481 = vmatprep.mubr.f32.mxu0 %v413
      %482 = vmatmul.mubr.f32.gmra.mrb[0].mxu0 %v402
      %v483 = vpop.f32.mrb[0].mxu0
      %v484 = vadd.f32 0.0, %v483
      %v485 = vpop.f32.mrb[0].mxu0
      %486 = vmatprep.mubr.f32.mxu0 %v415
      %487 = vmatmul.mubr.f32.gmra.mrb[0].mxu0 %v407
      %v488 = vpop.f32.mrb[0].mxu0
      %v489 = vadd.f32 0.0, %v488
      %v490 = vpop.f32.mrb[0].mxu0
      %491 = vdwg.mxu0
      %v492 = vsel %vm412, %v351, 0
      %v494 = vsel %vm412, %v353, 0
      %496 = vmatprep.subr.mxu0 0.0
      %497 = vmatpush1.msra.mxu0 %v356
      %498 = vmatprep.subr.mxu0 0.0
      %499 = vmatpush1.msra.mxu0 %v357
      %500 = vmatprep.subr.mxu0 0.0
      %501 = vmatpush1.msra.mxu0 %v358
      %502 = vmatprep.subr.mxu0 0.0
      %503 = vmatpush1.msra.mxu0 %v359
      %504 = vmatprep.subr.mxu0 0.0
      %505 = vmatpush1.msra.mxu0 %v360
      %506 = vmatprep.subr.mxu0 0.0
      %507 = vmatpush1.msra.mxu0 %v361
      %508 = vmatprep.subr.mxu0 0.0
      %509 = vmatpush1.msra.mxu0 %v362
      %510 = vmatprep.subr.mxu0 0.0
      %511 = vmatpush1.msra.mxu0 %v363
      %512 = vmatprep.subr.mxu0 0.0
      %513 = vmatpush1.msra.mxu0 %v364
      %514 = vmatprep.subr.mxu0 0.0
      %515 = vmatpush1.msra.mxu0 %v365
      %516 = vmatprep.subr.mxu0 0.0
      %517 = vmatpush1.msra.mxu0 %v366
      %518 = vmatprep.subr.mxu0 0.0
      %519 = vmatpush1.msra.mxu0 %v367
      %520 = vmatprep.subr.mxu0 0.0
      %521 = vmatpush1.msra.mxu0 %v368
      %522 = vmatprep.subr.mxu0 0.0
      %523 = vmatpush1.msra.mxu0 %v369
      %524 = vmatprep.subr.mxu0 0.0
      %525 = vmatpush1.msra.mxu0 %v370
      %526 = vmatprep.subr.mxu0 0.0
      %527 = vmatpush1.msra.mxu0 %v371
      %528 = vmatprep.subr.mxu0 0.0
      %529 = vmatpush1.msra.mxu0 %v372
      %530 = vmatprep.subr.mxu0 0.0
      %531 = vmatpush1.msra.mxu0 %v373
      %532 = vmatprep.subr.mxu0 0.0
      %533 = vmatpush1.msra.mxu0 0.0
      %534 = vmatprep.subr.mxu0 0.0
      %535 = vmatpush1.msra.mxu0 0.0
      %536 = vmatprep.subr.mxu0 0.0
      %537 = vmatpush1.msra.mxu0 0.0
      %538 = vmatprep.subr.mxu0 0.0
      %539 = vmatpush1.msra.mxu0 0.0
      %540 = vmatprep.subr.mxu0 0.0
      %541 = vmatpush1.msra.mxu0 0.0
      %542 = vmatprep.subr.mxu0 0.0
      %543 = vmatpush1.msra.mxu0 0.0
      %544 = vmatprep.subr.mxu0 0.0
      %545 = vmatpush1.msra.mxu0 0.0
      %546 = vmatprep.subr.mxu0 0.0
      %547 = vmatpush1.msra.mxu0 0.0
      %548 = vmatprep.subr.mxu0 0.0
      %549 = vmatpush1.msra.mxu0 0.0
      %550 = vmatprep.subr.mxu0 0.0
      %551 = vmatpush1.msra.mxu0 0.0
      %552 = vmatprep.subr.mxu0 0.0
      %553 = vmatpush1.msra.mxu0 0.0
      %554 = vmatprep.subr.mxu0 0.0
      %555 = vmatpush1.msra.mxu0 0.0
      %556 = vmatprep.subr.mxu0 0.0
      %557 = vmatpush1.msra.mxu0 0.0
      %558 = vmatprep.subr.mxu0 0.0
      %559 = vmatpush1.msra.mxu0 0.0
      %560 = vmatprep.mubr.f32.mxu0 %v492
      %561 = vmatmul.mubr.f32.gmra.mrb[0].mxu0 %v350
      %v562 = vpop.f32.mrb[0].mxu0
      %v563 = vadd.f32 %v484, %v562
      %v564 = vpop.f32.mrb[0].mxu0
      %565 = vmatprep.mubr.f32.mxu0 %v494
      %566 = vmatmul.mubr.f32.gmra.mrb[0].mxu0 %v352
      %v567 = vpop.f32.mrb[0].mxu0
      %v568 = vadd.f32 %v489, %v567
      %v569 = vpop.f32.mrb[0].mxu0
      %570 = vdwg.mxu0
      %s571 = scalar_lea.vmem %s3, 288
      %v572 = vld [vmem:[%s571] sm:$0xff]
      %v573 = vld [vmem:[%s571 + $0x8] sm:$0xff]
      %v574 = vld [vmem:[%s571 + $0x10] sm:$0xff]
      %v575 = vld [vmem:[%s571 + $0x18] sm:$0xff]
      %v576 = vld [vmem:[%s571 + $0x20] sm:$0xff]
      %v577 = vld [vmem:[%s571 + $0x28] sm:$0xff]
      %v578 = vld [vmem:[%s571 + $0x30] sm:$0xff]
      %v579 = vld [vmem:[%s571 + $0x38] sm:$0xff]
      %v580 = vld [vmem:[%s571 + $0x40] sm:$0xff]
      %v581 = vld [vmem:[%s571 + $0x48] sm:$0xff]
      %v582 = vld [vmem:[%s571 + $0x50] sm:$0xff]
      %v583 = vld [vmem:[%s571 + $0x58] sm:$0xff]
      %v584 = vld [vmem:[%s571 + $0x60] sm:$0xff]
      %v585 = vld [vmem:[%s571 + $0x68] sm:$0xff]
      %v586 = vld [vmem:[%s571 + $0x70] sm:$0xff]
      %v587 = vld [vmem:[%s571 + $0x78] sm:$0xff]
      %v588 = vld [vmem:[%s571 + $0x80] sm:$0xff]
      %v589 = vld [vmem:[%s571 + $0x88] sm:$0xff]
      %vm590 = vcmask 1045504
      %v591 = vrot.slane %v350, 2
      %v592 = vrot.slane %v352, 2
      %v593 = vsel %vm590, %v591, %v592
      %v594 = vrot.slane %v351, 2
      %v595 = vrot.slane %v353, 2
      %v596 = vsel %vm590, %v594, %v595
      %v597 = vrot.slane %v354, 2
      %v598 = vsel %vm590, %v592, %v597
      %v599 = vrot.slane %v355, 2
      %v600 = vsel %vm590, %v595, %v599
      %v603 = vsel %vm412, %v596, 0
      %v605 = vsel %vm412, %v600, 0
      %607 = vmatprep.subr.mxu0 0.0
      %608 = vmatpush1.msra.mxu0 %v572
      %609 = vmatprep.subr.mxu0 0.0
      %610 = vmatpush1.msra.mxu0 %v573
      %611 = vmatprep.subr.mxu0 0.0
      %612 = vmatpush1.msra.mxu0 %v574
      %613 = vmatprep.subr.mxu0 0.0
      %614 = vmatpush1.msra.mxu0 %v575
      %615 = vmatprep.subr.mxu0 0.0
      %616 = vmatpush1.msra.mxu0 %v576
      %617 = vmatprep.subr.mxu0 0.0
      %618 = vmatpush1.msra.mxu0 %v577
      %619 = vmatprep.subr.mxu0 0.0
      %620 = vmatpush1.msra.mxu0 %v578
      %621 = vmatprep.subr.mxu0 0.0
      %622 = vmatpush1.msra.mxu0 %v579
      %623 = vmatprep.subr.mxu0 0.0
      %624 = vmatpush1.msra.mxu0 %v580
      %625 = vmatprep.subr.mxu0 0.0
      %626 = vmatpush1.msra.mxu0 %v581
      %627 = vmatprep.subr.mxu0 0.0
      %628 = vmatpush1.msra.mxu0 %v582
      %629 = vmatprep.subr.mxu0 0.0
      %630 = vmatpush1.msra.mxu0 %v583
      %631 = vmatprep.subr.mxu0 0.0
      %632 = vmatpush1.msra.mxu0 %v584
      %633 = vmatprep.subr.mxu0 0.0
      %634 = vmatpush1.msra.mxu0 %v585
      %635 = vmatprep.subr.mxu0 0.0
      %636 = vmatpush1.msra.mxu0 %v586
      %637 = vmatprep.subr.mxu0 0.0
      %638 = vmatpush1.msra.mxu0 %v587
      %639 = vmatprep.subr.mxu0 0.0
      %640 = vmatpush1.msra.mxu0 %v588
      %641 = vmatprep.subr.mxu0 0.0
      %642 = vmatpush1.msra.mxu0 %v589
      %643 = vmatprep.subr.mxu0 0.0
      %644 = vmatpush1.msra.mxu0 0.0
      %645 = vmatprep.subr.mxu0 0.0
      %646 = vmatpush1.msra.mxu0 0.0
      %647 = vmatprep.subr.mxu0 0.0
      %648 = vmatpush1.msra.mxu0 0.0
      %649 = vmatprep.subr.mxu0 0.0
      %650 = vmatpush1.msra.mxu0 0.0
      %651 = vmatprep.subr.mxu0 0.0
      %652 = vmatpush1.msra.mxu0 0.0
      %653 = vmatprep.subr.mxu0 0.0
      %654 = vmatpush1.msra.mxu0 0.0
      %655 = vmatprep.subr.mxu0 0.0
      %656 = vmatpush1.msra.mxu0 0.0
      %657 = vmatprep.subr.mxu0 0.0
      %658 = vmatpush1.msra.mxu0 0.0
      %659 = vmatprep.subr.mxu0 0.0
      %660 = vmatpush1.msra.mxu0 0.0
      %661 = vmatprep.subr.mxu0 0.0
      %662 = vmatpush1.msra.mxu0 0.0
      %663 = vmatprep.subr.mxu0 0.0
      %664 = vmatpush1.msra.mxu0 0.0
      %665 = vmatprep.subr.mxu0 0.0
      %666 = vmatpush1.msra.mxu0 0.0
      %667 = vmatprep.subr.mxu0 0.0
      %668 = vmatpush1.msra.mxu0 0.0
      %669 = vmatprep.subr.mxu0 0.0
      %670 = vmatpush1.msra.mxu0 0.0
      %671 = vmatprep.mubr.f32.mxu0 %v603
      %672 = vmatmul.mubr.f32.gmra.mrb[0].mxu0 %v593
      %v673 = vpop.f32.mrb[0].mxu0
      %v674 = vadd.f32 0.0, %v673
      %v675 = vpop.f32.mrb[0].mxu0
      %676 = vmatprep.mubr.f32.mxu0 %v605
      %677 = vmatmul.mubr.f32.gmra.mrb[0].mxu0 %v598
      %v678 = vpop.f32.mrb[0].mxu0
      %v679 = vadd.f32 0.0, %v678
      %v680 = vpop.f32.mrb[0].mxu0
      %681 = vdwg.mxu0
      %v682 = vadd.f32 %v563, %v674
      %v683 = vadd.f32 %v568, %v679
      %v684 = vld [vmem:[%s4] sm:$0x1]
      %v686 = vlaneseq
      %v687 = vshrl.u32 %v686, 7
      %v688 = vsub.s32 0, %v687
      %v689 = vrot.slane %v684, %v688
      %v691 = vadd.f32 %v682, %v689
      %v692 = vadd.f32 %v683, %v689
      %v693 = vmax.f32 %v691, 0.0
      %v694 = vmax.f32 %v692, 0.0
      %v695 = vmin.f32 %v693, 6.0
      %v696 = vmin.f32 %v694, 6.0
      %v697 = vld [vmem:[%s320] sm:$0xff]
      %v698 = vld [vmem:[%s320 + $0x8] sm:$0xff]
      %v699 = vld [vmem:[%s6] sm:$0xff]
      %v700 = vld [vmem:[%s6 + $0x8] sm:$0xff]
      %v701 = vld [vmem:[%s6 + $0x10] sm:$0xff]
      %v702 = vld [vmem:[%s6 + $0x18] sm:$0xff]
      %v703 = vld [vmem:[%s6 + $0x20] sm:$0xff]
      %v704 = vld [vmem:[%s6 + $0x28] sm:$0xff]
      %v705 = vld [vmem:[%s6 + $0x30] sm:$0xff]
      %v706 = vld [vmem:[%s6 + $0x38] sm:$0xff]
      %v707 = vld [vmem:[%s7] sm:$0x1]
      %v709 = vlaneseq
      %v710 = vshrl.u32 %v709, 7
      %v711 = vsub.s32 0, %v710
      %v712 = vrot.slane %v707, %v711
      %vm714 = vcmask 523264
      %v716 = vsel %vm714, %v697, 0
      %v719 = vsel %vm714, %v698, 0
      %721 = vmatprep.subr.mxu0 0.0
      %722 = vmatpush1.msra.mxu0 %v699
      %723 = vmatprep.subr.mxu0 0.0
      %724 = vmatpush1.msra.mxu0 %v700
      %725 = vmatprep.subr.mxu0 0.0
      %726 = vmatpush1.msra.mxu0 %v701
      %727 = vmatprep.subr.mxu0 0.0
      %728 = vmatpush1.msra.mxu0 %v702
      %729 = vmatprep.subr.mxu0 0.0
      %730 = vmatpush1.msra.mxu0 %v703
      %731 = vmatprep.subr.mxu0 0.0
      %732 = vmatpush1.msra.mxu0 %v704
      %733 = vmatprep.subr.mxu0 0.0
      %734 = vmatpush1.msra.mxu0 %v705
      %735 = vmatprep.subr.mxu0 0.0
      %736 = vmatpush1.msra.mxu0 %v706
      %737 = vmatprep.subr.mxu0 0.0
      %738 = vmatpush1.msra.mxu0 0.0
      %739 = vmatprep.subr.mxu0 0.0
      %740 = vmatpush1.msra.mxu0 0.0
      %741 = vmatprep.subr.mxu0 0.0
      %742 = vmatpush1.msra.mxu0 0.0
      %743 = vmatprep.subr.mxu0 0.0
      %744 = vmatpush1.msra.mxu0 0.0
      %745 = vmatprep.subr.mxu0 0.0
      %746 = vmatpush1.msra.mxu0 0.0
      %747 = vmatprep.subr.mxu0 0.0
      %748 = vmatpush1.msra.mxu0 0.0
      %749 = vmatprep.subr.mxu0 0.0
      %750 = vmatpush1.msra.mxu0 0.0
      %751 = vmatprep.subr.mxu0 0.0
      %752 = vmatpush1.msra.mxu0 0.0
      %753 = vmatprep.subr.mxu0 0.0
      %754 = vmatpush1.msra.mxu0 0.0
      %755 = vmatprep.subr.mxu0 0.0
      %756 = vmatpush1.msra.mxu0 0.0
      %757 = vmatprep.subr.mxu0 0.0
      %758 = vmatpush1.msra.mxu0 0.0
      %759 = vmatprep.subr.mxu0 0.0
      %760 = vmatpush1.msra.mxu0 0.0
      %761 = vmatprep.subr.mxu0 0.0
      %762 = vmatpush1.msra.mxu0 0.0
      %763 = vmatprep.subr.mxu0 0.0
      %764 = vmatpush1.msra.mxu0 0.0
      %765 = vmatprep.subr.mxu0 0.0
      %766 = vmatpush1.msra.mxu0 0.0
      %767 = vmatprep.subr.mxu0 0.0
      %768 = vmatpush1.msra.mxu0 0.0
      %769 = vmatprep.subr.mxu0 0.0
      %770 = vmatpush1.msra.mxu0 0.0
      %771 = vmatprep.subr.mxu0 0.0
      %772 = vmatpush1.msra.mxu0 0.0
      %773 = vmatprep.subr.mxu0 0.0
      %774 = vmatpush1.msra.mxu0 0.0
      %775 = vmatprep.subr.mxu0 0.0
      %776 = vmatpush1.msra.mxu0 0.0
      %777 = vmatprep.subr.mxu0 0.0
      %778 = vmatpush1.msra.mxu0 0.0
      %779 = vmatprep.subr.mxu0 0.0
      %780 = vmatpush1.msra.mxu0 0.0
      %781 = vmatprep.subr.mxu0 0.0
      %782 = vmatpush1.msra.mxu0 0.0
      %783 = vmatprep.subr.mxu0 0.0
      %784 = vmatpush1.msra.mxu0 0.0
      %785 = vmatprep.mubr.f32.mxu0 0.0
      %786 = vmatmul.mubr.f32.gmra.mrb[0].mxu0 %v716
      %v787 = vpop.f32.mrb[0].mxu0
      %v788 = vadd.f32 %v712, %v787
      %v789 = vpop.f32.mrb[0].mxu0
      %790 = vmatprep.mubr.f32.mxu0 0.0
      %791 = vmatmul.mubr.f32.gmra.mrb[0].mxu0 %v719
      %v792 = vpop.f32.mrb[0].mxu0
      %v793 = vadd.f32 %v712, %v792
      %v794 = vpop.f32.mrb[0].mxu0
      %795 = vdwg.mxu0
      %v796 = vadd.f32 %v695, %v788
      %v797 = vadd.f32 %v696, %v793
      %798 = vst [vmem:[%s325] sm:$0xff] %v796
      %799 = vst [vmem:[%s325 + $0x8] sm:$0xff] %v797
      %p800 = scmp.lt.s32.totalorder %s19, 1
      %s801 = scalar_select %p800, %s19, 1
      %s802 = smul.addr %s801, 2
      %s803 = smul.addr %s802, 8
      %s804 = scalar_lea.vmem %s8, %s803
      // Predicated region
      $region53: #{resnet_block_2d_forward.7} parent=51 // pred_check
        %p805 = pneg %p215
      $region54: #{resnet_block_2d_forward.7} parent=51 // pred_check_branch
        %807 = sbr.rel (%p805) target = $region56
      $region55: #{resnet_block_2d_forward.7} parent=51 // pred_region
        _
      $region56: #{resnet_block_2d_forward.7} parent=51 // pred_fallthru
        _
    $region52: #{resnet_block_2d_forward.7} parent=5 // pred_fallthru
      _
    %p808 = scmp.le.s32.totalorder 2, %s14
    // Predicated region
    $region57: #{resnet_block_2d_forward.7} parent=5 // pred_check
      %p809 = pneg %p808
    $region58: #{resnet_block_2d_forward.7} parent=5 // pred_check_branch
      %811 = sbr.rel (%p809) target = $region60
    $region59: #{resnet_block_2d_forward.7} parent=5 // pred_region
      %s812 = ssub.s32 %s14, 2
      // Predicated region
      $region61: #{resnet_block_2d_forward.7} parent=59 // pred_check
        %p813 = pneg %p221
      $region62: #{resnet_block_2d_forward.7} parent=59 // pred_check_branch
        %815 = sbr.rel (%p813) target = $region64
      $region63: #{resnet_block_2d_forward.7} parent=59 // pred_region
        %p816 = scmp.lt.s32.totalorder %s20, 1
        %s817 = scalar_select %p816, %s20, 1
        %s818 = smul.addr %s817, 2
        %s819 = smul.addr %s818, 8
        %s820 = scalar_lea.vmem %s8, %s819
      $region64: #{resnet_block_2d_forward.7} parent=59 // pred_fallthru
        _
    $region60: #{resnet_block_2d_forward.7} parent=5 // pred_fallthru
      _
  $region6: #{resnet_block_2d_forward.7} parent=0 // loop_footer
    %s18 = sadd.s32 1, %s14
  $region7: #{resnet_block_2d_forward.7} parent=0 // loop_footer_branch
    %13 = sbr.rel target = $region3
  $region8: #{resnet_block_2d_forward.7} parent=0 // loop_exit
    _

</llo_original>
